<compile_context>
chip_gen: v6e
topology: v6e:2x2x1
jax: 0.10.0
libtpu: 0.0.40
codegen_flags: <defaults>
</compile_context>

<pallas_src>
import functools
import math

import jax
import jax.numpy as jnp
from jax.experimental import pallas as pl
from jax.experimental.pallas import tpu as pltpu


def _layer_norm(z, gamma, beta, eps=1e-5):
    # Fused one-pass mean/variance: var = E[z^2] - mu^2 (halves cross-lane reductions).
    mu = jnp.mean(z, axis=-1, keepdims=True)
    var = jnp.maximum(jnp.mean(z * z, axis=-1, keepdims=True) - mu * mu, 0.0)
    return (z - mu) * jax.lax.rsqrt(var + eps) * gamma + beta


def transformer_block_kernel(
    x_ref,        # (Bt, S, E)  f32
    wqkv_ref,     # (E, 3E)     bf16 (Q part pre-scaled by 1/sqrt(Dh))
    bqkv_ref,     # (1, 3E)     f32  (Q part pre-scaled)
    wo_ref,       # (E, E)      bf16 output projection
    w1_ref,       # (E, F)      bf16
    bf1_ref,      # (1, F)      f32
    w2_ref,       # (F, E)      bf16
    vec_ref,      # (6, E)      f32: rows = [bo, g1, be1, bf2, g2, be2]
    o_ref,        # (Bt, S, E)  f32
    merged_ref,   # (Bt, S, E)  f32 VMEM scratch: merged per-head attention outputs
    *, num_heads,
):
    Bt, S, E = x_ref.shape
    Dh = E // num_heads
    R = Bt * S
    cdt = wqkv_ref.dtype  # MXU compute dtype (bf16)

    x = x_ref[...].reshape(R, E)                 # residual path stays in f32
    vecs = vec_ref[...]
    bo, g1, be1, bf2, g2, be2 = (vecs[i:i + 1, :] for i in range(6))

    # ---- fused QKV projection: one (R,E)@(E,3E) MXU pass, f32 accumulation ----
    qkv = jnp.dot(x.astype(cdt), wqkv_ref[...],
                  preferred_element_type=jnp.float32) + bqkv_ref[...]
    qkv_bf = qkv.astype(cdt)                     # cast once; heads slice from this

    # ---- multi-head attention: per-head score/PV einsums (batched over the batch tile);
    #      each head's output lands in its static Dh lane-slice of the merged scratch ----
    for h in range(num_heads):
        lo = h * Dh
        qh = qkv_bf[:, lo:lo + Dh].reshape(Bt, S, Dh)
        kh = qkv_bf[:, E + lo:E + lo + Dh].reshape(Bt, S, Dh)
        vh = qkv_bf[:, 2 * E + lo:2 * E + lo + Dh].reshape(Bt, S, Dh)
        s = jnp.einsum("bsd,btd->bst", qh, kh,
                       preferred_element_type=jnp.float32)          # (Bt, S, S)
        s = s - jnp.max(s, axis=-1, keepdims=True)
        p = jnp.exp(s)
        p = p * pl.reciprocal(jnp.sum(p, axis=-1, keepdims=True), approx=True)
        oh = jnp.einsum("bst,btd->bsd", p.astype(cdt), vh,
                        preferred_element_type=jnp.float32)          # (Bt, S, Dh)
        merged_ref[:, :, lo:lo + Dh] = oh

    # ---- single full-depth output projection: (R,E)@(E,E) (no per-head K=Dh matmuls) ----
    attn = jnp.dot(merged_ref[...].reshape(R, E).astype(cdt), wo_ref[...],
                   preferred_element_type=jnp.float32) + bo

    # ---- residual + LayerNorm 1 ----
    h1 = _layer_norm(x + attn, g1, be1)

    # ---- FFN: Linear -> ReLU -> Linear (dropout = identity in eval mode) ----
    ff = jnp.dot(h1.astype(cdt), w1_ref[...],
                 preferred_element_type=jnp.float32) + bf1_ref[...]
    ff = jnp.maximum(ff, 0.0).astype(cdt)        # drop the f32 (R,F) intermediate early
    ff = jnp.dot(ff, w2_ref[...], preferred_element_type=jnp.float32) + bf2

    # ---- residual + LayerNorm 2 ----
    o_ref[...] = _layer_norm(h1 + ff, g2, be2).reshape(Bt, S, E).astype(o_ref.dtype)


# ----------------------------- sizing helpers -----------------------------
def _vmem_budget_bytes():
    """~80% of per-TensorCore VMEM (leaves headroom for compiler scratch)."""
    try:
        cap = int(pltpu.get_tpu_info().vmem_capacity_bytes)
    except Exception:
        cap = 64 * 2 ** 20  # conservative default (v7x per-TC VMEM)
    return int(0.8 * cap)


def _est_vmem_bytes(block_b, S, E, F, wbytes):
    """Rough per-step VMEM footprint (single-buffered weights + pipelined IO + acts)."""
    R = block_b * S
    io = 4 * R * E * 4                       # double-buffered input + output blocks (f32)
    scratch = R * E * 4                      # merged-head scratch
    act = (R * 3 * E * 4 + R * 3 * E * 2     # qkv f32 + bf16 copy
           + 2 * R * E * 4                   # h1 / residual temps
           + R * F * 4 + R * F * 2           # FFN intermediate f32 + bf16
           + 2 * block_b * S * S * 4)        # scores + probs for one head
    return int(1.25 * (io + scratch + act)) + wbytes


def _pick_block_b(batch, seq, E, F, wbytes, budget_bytes, target_rows=512):
    """Largest divisor of `batch` that fits the VMEM budget, <= target_rows rows per
    step, and <= batch//2 so the parallel axis has >=2 steps (v7x megacore)."""
    cap = max(1, min(batch, max(1, target_rows // max(seq, 1))))
    if batch >= 2:
        cap = min(cap, batch // 2)
    for d in range(cap, 0, -1):
        if batch % d == 0 and _est_vmem_bytes(d, seq, E, F, wbytes) <= budget_bytes:
            return d
    return 1


def pack_layer_params(p, num_heads, compute_dtype=jnp.bfloat16):
    """Pack per-layer params: fused+scaled QKV, bf16 weights, one (6,E) vector slab."""
    E = p["wq"].shape[0]
    Dh = E // num_heads
    scale = 1.0 / math.sqrt(Dh)
    wqkv = jnp.concatenate([p["wq"] * scale, p["wk"], p["wv"]], axis=1)   # (E, 3E)
    bqkv = jnp.concatenate([p["bq"] * scale, p["bk"], p["bv"]], axis=1)   # (1, 3E)
    vecs = jnp.concatenate(
        [p["bo"], p["g1"], p["be1"], p["bf2"], p["g2"], p["be2"]], axis=0)  # (6, E)
    return {
        "wqkv": wqkv.astype(compute_dtype),
        "bqkv": bqkv.astype(jnp.float32),
        "wo": p["wo"].astype(compute_dtype),
        "w1": p["w1"].astype(compute_dtype),
        "bf1": p["bf1"].astype(jnp.float32),
        "w2": p["w2"].astype(compute_dtype),
        "vecs": vecs.astype(jnp.float32),
    }


def transformer_block(x, pp, num_heads, *, target_rows=512):
    B, S, E = x.shape
    F = pp["w1"].shape[1]
    H = num_heads
    Dh = E // H

    weight_args = (pp["wqkv"], pp["bqkv"], pp["wo"], pp["w1"], pp["bf1"],
                   pp["w2"], pp["vecs"])
    wbytes = sum(int(a.size) * a.dtype.itemsize for a in weight_args)

    budget = _vmem_budget_bytes()
    block_b = _pick_block_b(B, S, E, F, wbytes, budget, target_rows)
    grid = (B // block_b,)

    def rep(arr):
        # Whole-array block, same tile every grid step -> DMA'd once.
        # Single-buffer it: the default pipeline would allocate 2 buffers for nothing.
        zeros = (0,) * arr.ndim
        try:
            return pl.BlockSpec(arr.shape, lambda i: zeros,
                                pipeline_mode=pl.Buffered(1))
        except Exception:
            return pl.BlockSpec(arr.shape, lambda i: zeros)

    in_specs = [pl.BlockSpec((block_b, S, E), lambda i: (i, 0, 0))]
    in_specs += [rep(a) for a in weight_args]
    out_specs = pl.BlockSpec((block_b, S, E), lambda i: (i, 0, 0))

    vmem_limit = int(min(budget,
                         max(32 * 2 ** 20, _est_vmem_bytes(block_b, S, E, F, wbytes))))

    flops = (2 * B * S * E * 3 * E          # fused QKV
             + 4 * B * H * S * S * Dh       # QK^T and PV
             + 2 * B * S * E * E            # output projection
             + 4 * B * S * E * F)           # FFN
    transcendentals = B * H * S * S + 4 * B * S
    # Weights have a constant index_map -> DMA'd once, not once per grid step.
    bytes_accessed = 2 * B * S * E * 4 + wbytes

    kernel = functools.partial(transformer_block_kernel, num_heads=num_heads)
    return pl.pallas_call(
        kernel,
        out_shape=jax.ShapeDtypeStruct((B, S, E), jnp.float32),
        grid_spec=pltpu.PrefetchScalarGridSpec(
            num_scalar_prefetch=0,
            grid=grid,
            in_specs=in_specs,
            out_specs=out_specs,
            scratch_shapes=[pltpu.VMEM((block_b, S, E), jnp.float32)],
        ),
        compiler_params=pltpu.CompilerParams(
            dimension_semantics=("parallel",),
            vmem_limit_bytes=vmem_limit,
        ),
        cost_estimate=pl.CostEstimate(
            flops=int(flops),
            transcendentals=int(transcendentals),
            bytes_accessed=int(bytes_accessed),
        ),
    )(x, *weight_args)


def transformer_encoder(x, packed_layers, num_heads):
    for pp in packed_layers:
        x = transformer_block(x, pp, num_heads)
    return x


# ----------------------------- pure-JAX f32 reference -----------------------------
def reference_block(x, p, num_heads):
    B, S, E = x.shape
    Dh = E // num_heads
    q = x @ p["wq"] + p["bq"]
    k = x @ p["wk"] + p["bk"]
    v = x @ p["wv"] + p["bv"]

    def split(t):  # (B,S,E) -> (B,H,S,Dh)
        return t.reshape(B, S, num_heads, Dh).transpose(0, 2, 1, 3)

    qh, kh, vh = split(q), split(k), split(v)
    s = jnp.einsum("bhsd,bhtd->bhst", qh, kh) / math.sqrt(Dh)
    a = jnp.einsum("bhst,bhtd->bhsd", jax.nn.softmax(s, axis=-1), vh)
    a = a.transpose(0, 2, 1, 3).reshape(B, S, E)
    attn_out = a @ p["wo"] + p["bo"]

    def ln(z, g, b):
        mu = jnp.mean(z, axis=-1, keepdims=True)
        var = jnp.mean((z - mu) ** 2, axis=-1, keepdims=True)
        return (z - mu) / jnp.sqrt(var + 1e-5) * g + b

    h1 = ln(x + attn_out, p["g1"], p["be1"])
    ff = jnp.maximum(h1 @ p["w1"] + p["bf1"], 0.0) @ p["w2"] + p["bf2"]
    return ln(h1 + ff, p["g2"], p["be2"])


def reference_encoder(x, layers, num_heads):
    for p in layers:
        x = reference_block(x, p, num_heads)
    return x


def init_layer_params(key, embed_dim, ff_dim):
    ks = jax.random.split(key, 16)
    E, F = embed_dim, ff_dim
    sc = 0.1
    n = jax.random.normal
    return {
        # weights stored pre-transposed: y = x @ W + b
        "wq": sc * n(ks[0], (E, E), jnp.float32),
        "wk": sc * n(ks[1], (E, E), jnp.float32),
        "wv": sc * n(ks[2], (E, E), jnp.float32),
        "bq": sc * n(ks[3], (1, E), jnp.float32),
        "bk": sc * n(ks[4], (1, E), jnp.float32),
        "bv": sc * n(ks[5], (1, E), jnp.float32),
        "wo": sc * n(ks[6], (E, E), jnp.float32),
        "bo": sc * n(ks[7], (1, E), jnp.float32),
        "g1": 1.0 + sc * n(ks[8], (1, E), jnp.float32),
        "be1": sc * n(ks[9], (1, E), jnp.float32),
        "w1": sc * n(ks[10], (E, F), jnp.float32),
        "bf1": sc * n(ks[11], (1, F), jnp.float32),
        "w2": sc * n(ks[12], (F, E), jnp.float32),
        "bf2": sc * n(ks[13], (1, E), jnp.float32),
        "g2": 1.0 + sc * n(ks[14], (1, E), jnp.float32),
        "be2": sc * n(ks[15], (1, E), jnp.float32),
    }


if __name__ == "__main__":
    # TransformerEncoder(num_layers=2, embed_dim=32, num_heads=4, ff_dim=64), eval mode.
    B, S, E, H, FF, L = 2, 8, 32, 4, 64, 2
    key = jax.random.PRNGKey(0)
    keys = jax.random.split(key, L + 1)
    x = jax.random.normal(keys[0], (B, S, E), jnp.float32)
    layers = [init_layer_params(k, E, FF) for k in keys[1:]]
    packed = [pack_layer_params(p, H) for p in layers]

    out = jax.block_until_ready(transformer_encoder(x, packed, H))
    ref = jax.block_until_ready(reference_encoder(x, layers, H))

    assert out.shape == (B, S, E)
    # Tolerance reflects bf16 MXU inputs + approx softmax reciprocal vs the f32 reference.
    assert jnp.allclose(out, ref, rtol=4e-2, atol=4e-2), "mismatch vs reference"
    print("KERNEL_OK")
</pallas_src>

<mosaic_0001>
module attributes {stable_mosaic.version = 11 : i64} {
  func.func @transformer_block_kernel(%arg0: i32, %arg1: memref<1x8x32xf32, #tpu.memory_space<vmem>>, %arg2: memref<32x96xbf16, #tpu.memory_space<vmem>>, %arg3: memref<1x96xf32, #tpu.memory_space<vmem>>, %arg4: memref<32x32xbf16, #tpu.memory_space<vmem>>, %arg5: memref<32x64xbf16, #tpu.memory_space<vmem>>, %arg6: memref<1x64xf32, #tpu.memory_space<vmem>>, %arg7: memref<64x32xbf16, #tpu.memory_space<vmem>>, %arg8: memref<6x32xf32, #tpu.memory_space<vmem>>, %arg9: memref<1x8x32xf32, #tpu.memory_space<vmem>>, %arg10: memref<1x8x32xf32, #tpu.memory_space<vmem>>) attributes {dimension_semantics = [#tpu.dimension_semantics<parallel>], iteration_bounds = array<i64: 2>, scalar_prefetch = 0 : i64, scratch_operands = 1 : i64, tpu.core_type = #tpu.core_type<tc>, window_params = [{transform_indices = @transform_0, window_bounds = array<i64: 1, 8, 32>}, {pipeline_mode = #tpu.pipeline_mode<synchronous>, transform_indices = @transform_1, window_bounds = array<i64: 32, 96>}, {pipeline_mode = #tpu.pipeline_mode<synchronous>, transform_indices = @transform_2, window_bounds = array<i64: 1, 96>}, {pipeline_mode = #tpu.pipeline_mode<synchronous>, transform_indices = @transform_3, window_bounds = array<i64: 32, 32>}, {pipeline_mode = #tpu.pipeline_mode<synchronous>, transform_indices = @transform_4, window_bounds = array<i64: 32, 64>}, {pipeline_mode = #tpu.pipeline_mode<synchronous>, transform_indices = @transform_5, window_bounds = array<i64: 1, 64>}, {pipeline_mode = #tpu.pipeline_mode<synchronous>, transform_indices = @transform_6, window_bounds = array<i64: 64, 32>}, {pipeline_mode = #tpu.pipeline_mode<synchronous>, transform_indices = @transform_7, window_bounds = array<i64: 6, 32>}, {transform_indices = @transform_8, window_bounds = array<i64: 1, 8, 32>}]} {
    %c0 = arith.constant 0 : index
    %c0_0 = arith.constant 0 : index
    %c0_1 = arith.constant 0 : index
    %0 = vector.load %arg1[%c0, %c0_0, %c0_1] : memref<1x8x32xf32, #tpu.memory_space<vmem>>, vector<1x8x32xf32>
    %1 = vector.shape_cast %0 : vector<1x8x32xf32> to vector<8x32xf32>
    %c0_2 = arith.constant 0 : index
    %c0_3 = arith.constant 0 : index
    %2 = vector.load %arg8[%c0_2, %c0_3] : memref<6x32xf32, #tpu.memory_space<vmem>>, vector<6x32xf32>
    %3 = vector.extract_strided_slice %2 {offsets = [0, 0], sizes = [1, 32], strides = [1, 1]} : vector<6x32xf32> to vector<1x32xf32>
    %4 = vector.extract_strided_slice %2 {offsets = [1, 0], sizes = [1, 32], strides = [1, 1]} : vector<6x32xf32> to vector<1x32xf32>
    %5 = vector.extract_strided_slice %2 {offsets = [2, 0], sizes = [1, 32], strides = [1, 1]} : vector<6x32xf32> to vector<1x32xf32>
    %6 = vector.extract_strided_slice %2 {offsets = [3, 0], sizes = [1, 32], strides = [1, 1]} : vector<6x32xf32> to vector<1x32xf32>
    %7 = vector.extract_strided_slice %2 {offsets = [4, 0], sizes = [1, 32], strides = [1, 1]} : vector<6x32xf32> to vector<1x32xf32>
    %8 = vector.extract_strided_slice %2 {offsets = [5, 0], sizes = [1, 32], strides = [1, 1]} : vector<6x32xf32> to vector<1x32xf32>
    %9 = arith.truncf %1 : vector<8x32xf32> to vector<8x32xbf16>
    %c0_4 = arith.constant 0 : index
    %c0_5 = arith.constant 0 : index
    %10 = vector.load %arg2[%c0_4, %c0_5] : memref<32x96xbf16, #tpu.memory_space<vmem>>, vector<32x96xbf16>
    %cst = arith.constant dense<0.000000e+00> : vector<8x96xf32>
    %11 = tpu.matmul %9, %10, %cst {dimension_numbers = #tpu.dot_dimension_numbers<[1], [0], [0], [1], [0, 0, 1, 1], [], []>} : vector<8x32xbf16>, vector<32x96xbf16>, vector<8x96xf32> -> vector<8x96xf32>
    %c0_6 = arith.constant 0 : index
    %c0_7 = arith.constant 0 : index
    %12 = vector.load %arg3[%c0_6, %c0_7] : memref<1x96xf32, #tpu.memory_space<vmem>>, vector<1x96xf32>
    %13 = vector.broadcast %12 : vector<1x96xf32> to vector<8x96xf32>
    %14 = arith.addf %11, %13 : vector<8x96xf32>
    %15 = arith.truncf %14 : vector<8x96xf32> to vector<8x96xbf16>
    %16 = vector.extract_strided_slice %15 {offsets = [0, 0], sizes = [8, 8], strides = [1, 1]} : vector<8x96xbf16> to vector<8x8xbf16>
    %17 = vector.shape_cast %16 : vector<8x8xbf16> to vector<1x8x8xbf16>
    %18 = vector.extract_strided_slice %15 {offsets = [0, 32], sizes = [8, 8], strides = [1, 1]} : vector<8x96xbf16> to vector<8x8xbf16>
    %19 = vector.shape_cast %18 : vector<8x8xbf16> to vector<1x8x8xbf16>
    %20 = vector.extract_strided_slice %15 {offsets = [0, 64], sizes = [8, 8], strides = [1, 1]} : vector<8x96xbf16> to vector<8x8xbf16>
    %21 = vector.shape_cast %20 : vector<8x8xbf16> to vector<1x8x8xbf16>
    "tpu.trace_start"() <{level = 10 : i32, message = "bsd,btd->bst"}> : () -> ()
    %cst_8 = arith.constant dense<0.000000e+00> : vector<1x8x8xf32>
    %22 = tpu.matmul %17, %19, %cst_8 {dimension_numbers = #tpu.dot_dimension_numbers<[2], [2], [1], [1], [0, 0, 0, 1, 1, 1], [0], [0]>} : vector<1x8x8xbf16>, vector<1x8x8xbf16>, vector<1x8x8xf32> -> vector<1x8x8xf32>
    "tpu.trace_stop"() : () -> ()
    %cst_9 = arith.constant dense<0xFF800000> : vector<1x8xf32>
    %23 = vector.multi_reduction <maximumf>, %22, %cst_9 [2] : vector<1x8x8xf32> to vector<1x8xf32>
    %24 = vector.shape_cast %23 : vector<1x8xf32> to vector<1x8x1xf32>
    %25 = vector.broadcast %24 : vector<1x8x1xf32> to vector<1x8x8xf32>
    %26 = arith.subf %22, %25 : vector<1x8x8xf32>
    %27 = math.exp %26 : vector<1x8x8xf32>
    %cst_10 = arith.constant dense<0.000000e+00> : vector<1x8xf32>
    %28 = vector.multi_reduction <add>, %27, %cst_10 [2] : vector<1x8x8xf32> to vector<1x8xf32>
    %29 = vector.shape_cast %28 : vector<1x8xf32> to vector<1x8x1xf32>
    %30 = tpu.reciprocal %29 {approx = true} : vector<1x8x1xf32> -> vector<1x8x1xf32>
    %31 = vector.broadcast %30 : vector<1x8x1xf32> to vector<1x8x8xf32>
    %32 = arith.mulf %27, %31 : vector<1x8x8xf32>
    %33 = arith.truncf %32 : vector<1x8x8xf32> to vector<1x8x8xbf16>
    "tpu.trace_start"() <{level = 10 : i32, message = "bst,btd->bsd"}> : () -> ()
    %cst_11 = arith.constant dense<0.000000e+00> : vector<1x8x8xf32>
    %34 = tpu.matmul %33, %21, %cst_11 {dimension_numbers = #tpu.dot_dimension_numbers<[2], [1], [1], [2], [0, 0, 0, 1, 1, 2], [0], [0]>} : vector<1x8x8xbf16>, vector<1x8x8xbf16>, vector<1x8x8xf32> -> vector<1x8x8xf32>
    "tpu.trace_stop"() : () -> ()
    %c0_12 = arith.constant 0 : index
    %c0_13 = arith.constant 0 : index
    %c0_14 = arith.constant 0 : index
    %35 = vector.load %arg10[%c0_12, %c0_13, %c0_14] : memref<1x8x32xf32, #tpu.memory_space<vmem>>, vector<1x8x8xf32>
    tpu.vector_store %arg10[%c0_12, %c0_13, %c0_14], %34 {strides = array<i32>} : memref<1x8x32xf32, #tpu.memory_space<vmem>>, vector<1x8x8xf32>,
    %36 = vector.extract_strided_slice %15 {offsets = [0, 8], sizes = [8, 8], strides = [1, 1]} : vector<8x96xbf16> to vector<8x8xbf16>
    %37 = vector.shape_cast %36 : vector<8x8xbf16> to vector<1x8x8xbf16>
    %38 = vector.extract_strided_slice %15 {offsets = [0, 40], sizes = [8, 8], strides = [1, 1]} : vector<8x96xbf16> to vector<8x8xbf16>
    %39 = vector.shape_cast %38 : vector<8x8xbf16> to vector<1x8x8xbf16>
    %40 = vector.extract_strided_slice %15 {offsets = [0, 72], sizes = [8, 8], strides = [1, 1]} : vector<8x96xbf16> to vector<8x8xbf16>
    %41 = vector.shape_cast %40 : vector<8x8xbf16> to vector<1x8x8xbf16>
    "tpu.trace_start"() <{level = 10 : i32, message = "bsd,btd->bst"}> : () -> ()
    %cst_15 = arith.constant dense<0.000000e+00> : vector<1x8x8xf32>
    %42 = tpu.matmul %37, %39, %cst_15 {dimension_numbers = #tpu.dot_dimension_numbers<[2], [2], [1], [1], [0, 0, 0, 1, 1, 1], [0], [0]>} : vector<1x8x8xbf16>, vector<1x8x8xbf16>, vector<1x8x8xf32> -> vector<1x8x8xf32>
    "tpu.trace_stop"() : () -> ()
    %cst_16 = arith.constant dense<0xFF800000> : vector<1x8xf32>
    %43 = vector.multi_reduction <maximumf>, %42, %cst_16 [2] : vector<1x8x8xf32> to vector<1x8xf32>
    %44 = vector.shape_cast %43 : vector<1x8xf32> to vector<1x8x1xf32>
    %45 = vector.broadcast %44 : vector<1x8x1xf32> to vector<1x8x8xf32>
    %46 = arith.subf %42, %45 : vector<1x8x8xf32>
    %47 = math.exp %46 : vector<1x8x8xf32>
    %cst_17 = arith.constant dense<0.000000e+00> : vector<1x8xf32>
    %48 = vector.multi_reduction <add>, %47, %cst_17 [2] : vector<1x8x8xf32> to vector<1x8xf32>
    %49 = vector.shape_cast %48 : vector<1x8xf32> to vector<1x8x1xf32>
    %50 = tpu.reciprocal %49 {approx = true} : vector<1x8x1xf32> -> vector<1x8x1xf32>
    %51 = vector.broadcast %50 : vector<1x8x1xf32> to vector<1x8x8xf32>
    %52 = arith.mulf %47, %51 : vector<1x8x8xf32>
    %53 = arith.truncf %52 : vector<1x8x8xf32> to vector<1x8x8xbf16>
    "tpu.trace_start"() <{level = 10 : i32, message = "bst,btd->bsd"}> : () -> ()
    %cst_18 = arith.constant dense<0.000000e+00> : vector<1x8x8xf32>
    %54 = tpu.matmul %53, %41, %cst_18 {dimension_numbers = #tpu.dot_dimension_numbers<[2], [1], [1], [2], [0, 0, 0, 1, 1, 2], [0], [0]>} : vector<1x8x8xbf16>, vector<1x8x8xbf16>, vector<1x8x8xf32> -> vector<1x8x8xf32>
    "tpu.trace_stop"() : () -> ()
    %c0_19 = arith.constant 0 : index
    %c0_20 = arith.constant 0 : index
    %c8 = arith.constant 8 : index
    %55 = vector.load %arg10[%c0_19, %c0_20, %c8] : memref<1x8x32xf32, #tpu.memory_space<vmem>>, vector<1x8x8xf32>
    tpu.vector_store %arg10[%c0_19, %c0_20, %c8], %54 {strides = array<i32>} : memref<1x8x32xf32, #tpu.memory_space<vmem>>, vector<1x8x8xf32>,
    %56 = vector.extract_strided_slice %15 {offsets = [0, 16], sizes = [8, 8], strides = [1, 1]} : vector<8x96xbf16> to vector<8x8xbf16>
    %57 = vector.shape_cast %56 : vector<8x8xbf16> to vector<1x8x8xbf16>
    %58 = vector.extract_strided_slice %15 {offsets = [0, 48], sizes = [8, 8], strides = [1, 1]} : vector<8x96xbf16> to vector<8x8xbf16>
    %59 = vector.shape_cast %58 : vector<8x8xbf16> to vector<1x8x8xbf16>
    %60 = vector.extract_strided_slice %15 {offsets = [0, 80], sizes = [8, 8], strides = [1, 1]} : vector<8x96xbf16> to vector<8x8xbf16>
    %61 = vector.shape_cast %60 : vector<8x8xbf16> to vector<1x8x8xbf16>
    "tpu.trace_start"() <{level = 10 : i32, message = "bsd,btd->bst"}> : () -> ()
    %cst_21 = arith.constant dense<0.000000e+00> : vector<1x8x8xf32>
    %62 = tpu.matmul %57, %59, %cst_21 {dimension_numbers = #tpu.dot_dimension_numbers<[2], [2], [1], [1], [0, 0, 0, 1, 1, 1], [0], [0]>} : vector<1x8x8xbf16>, vector<1x8x8xbf16>, vector<1x8x8xf32> -> vector<1x8x8xf32>
    "tpu.trace_stop"() : () -> ()
    %cst_22 = arith.constant dense<0xFF800000> : vector<1x8xf32>
    %63 = vector.multi_reduction <maximumf>, %62, %cst_22 [2] : vector<1x8x8xf32> to vector<1x8xf32>
    %64 = vector.shape_cast %63 : vector<1x8xf32> to vector<1x8x1xf32>
    %65 = vector.broadcast %64 : vector<1x8x1xf32> to vector<1x8x8xf32>
    %66 = arith.subf %62, %65 : vector<1x8x8xf32>
    %67 = math.exp %66 : vector<1x8x8xf32>
    %cst_23 = arith.constant dense<0.000000e+00> : vector<1x8xf32>
    %68 = vector.multi_reduction <add>, %67, %cst_23 [2] : vector<1x8x8xf32> to vector<1x8xf32>
    %69 = vector.shape_cast %68 : vector<1x8xf32> to vector<1x8x1xf32>
    %70 = tpu.reciprocal %69 {approx = true} : vector<1x8x1xf32> -> vector<1x8x1xf32>
    %71 = vector.broadcast %70 : vector<1x8x1xf32> to vector<1x8x8xf32>
    %72 = arith.mulf %67, %71 : vector<1x8x8xf32>
    %73 = arith.truncf %72 : vector<1x8x8xf32> to vector<1x8x8xbf16>
    "tpu.trace_start"() <{level = 10 : i32, message = "bst,btd->bsd"}> : () -> ()
    %cst_24 = arith.constant dense<0.000000e+00> : vector<1x8x8xf32>
    %74 = tpu.matmul %73, %61, %cst_24 {dimension_numbers = #tpu.dot_dimension_numbers<[2], [1], [1], [2], [0, 0, 0, 1, 1, 2], [0], [0]>} : vector<1x8x8xbf16>, vector<1x8x8xbf16>, vector<1x8x8xf32> -> vector<1x8x8xf32>
    "tpu.trace_stop"() : () -> ()
    %c0_25 = arith.constant 0 : index
    %c0_26 = arith.constant 0 : index
    %c16 = arith.constant 16 : index
    %75 = vector.load %arg10[%c0_25, %c0_26, %c16] : memref<1x8x32xf32, #tpu.memory_space<vmem>>, vector<1x8x8xf32>
    tpu.vector_store %arg10[%c0_25, %c0_26, %c16], %74 {strides = array<i32>} : memref<1x8x32xf32, #tpu.memory_space<vmem>>, vector<1x8x8xf32>,
    %76 = vector.extract_strided_slice %15 {offsets = [0, 24], sizes = [8, 8], strides = [1, 1]} : vector<8x96xbf16> to vector<8x8xbf16>
    %77 = vector.shape_cast %76 : vector<8x8xbf16> to vector<1x8x8xbf16>
    %78 = vector.extract_strided_slice %15 {offsets = [0, 56], sizes = [8, 8], strides = [1, 1]} : vector<8x96xbf16> to vector<8x8xbf16>
    %79 = vector.shape_cast %78 : vector<8x8xbf16> to vector<1x8x8xbf16>
    %80 = vector.extract_strided_slice %15 {offsets = [0, 88], sizes = [8, 8], strides = [1, 1]} : vector<8x96xbf16> to vector<8x8xbf16>
    %81 = vector.shape_cast %80 : vector<8x8xbf16> to vector<1x8x8xbf16>
    "tpu.trace_start"() <{level = 10 : i32, message = "bsd,btd->bst"}> : () -> ()
    %cst_27 = arith.constant dense<0.000000e+00> : vector<1x8x8xf32>
    %82 = tpu.matmul %77, %79, %cst_27 {dimension_numbers = #tpu.dot_dimension_numbers<[2], [2], [1], [1], [0, 0, 0, 1, 1, 1], [0], [0]>} : vector<1x8x8xbf16>, vector<1x8x8xbf16>, vector<1x8x8xf32> -> vector<1x8x8xf32>
    "tpu.trace_stop"() : () -> ()
    %cst_28 = arith.constant dense<0xFF800000> : vector<1x8xf32>
    %83 = vector.multi_reduction <maximumf>, %82, %cst_28 [2] : vector<1x8x8xf32> to vector<1x8xf32>
    %84 = vector.shape_cast %83 : vector<1x8xf32> to vector<1x8x1xf32>
    %85 = vector.broadcast %84 : vector<1x8x1xf32> to vector<1x8x8xf32>
    %86 = arith.subf %82, %85 : vector<1x8x8xf32>
    %87 = math.exp %86 : vector<1x8x8xf32>
    %cst_29 = arith.constant dense<0.000000e+00> : vector<1x8xf32>
    %88 = vector.multi_reduction <add>, %87, %cst_29 [2] : vector<1x8x8xf32> to vector<1x8xf32>
    %89 = vector.shape_cast %88 : vector<1x8xf32> to vector<1x8x1xf32>
    %90 = tpu.reciprocal %89 {approx = true} : vector<1x8x1xf32> -> vector<1x8x1xf32>
    %91 = vector.broadcast %90 : vector<1x8x1xf32> to vector<1x8x8xf32>
    %92 = arith.mulf %87, %91 : vector<1x8x8xf32>
    %93 = arith.truncf %92 : vector<1x8x8xf32> to vector<1x8x8xbf16>
    "tpu.trace_start"() <{level = 10 : i32, message = "bst,btd->bsd"}> : () -> ()
    %cst_30 = arith.constant dense<0.000000e+00> : vector<1x8x8xf32>
    %94 = tpu.matmul %93, %81, %cst_30 {dimension_numbers = #tpu.dot_dimension_numbers<[2], [1], [1], [2], [0, 0, 0, 1, 1, 2], [0], [0]>} : vector<1x8x8xbf16>, vector<1x8x8xbf16>, vector<1x8x8xf32> -> vector<1x8x8xf32>
    "tpu.trace_stop"() : () -> ()
    %c0_31 = arith.constant 0 : index
    %c0_32 = arith.constant 0 : index
    %c24 = arith.constant 24 : index
    %95 = vector.load %arg10[%c0_31, %c0_32, %c24] : memref<1x8x32xf32, #tpu.memory_space<vmem>>, vector<1x8x8xf32>
    tpu.vector_store %arg10[%c0_31, %c0_32, %c24], %94 {strides = array<i32>} : memref<1x8x32xf32, #tpu.memory_space<vmem>>, vector<1x8x8xf32>,
    %c0_33 = arith.constant 0 : index
    %c0_34 = arith.constant 0 : index
    %c0_35 = arith.constant 0 : index
    %96 = vector.load %arg10[%c0_33, %c0_34, %c0_35] : memref<1x8x32xf32, #tpu.memory_space<vmem>>, vector<1x8x32xf32>
    %97 = vector.shape_cast %96 : vector<1x8x32xf32> to vector<8x32xf32>
    %98 = arith.truncf %97 : vector<8x32xf32> to vector<8x32xbf16>
    %c0_36 = arith.constant 0 : index
    %c0_37 = arith.constant 0 : index
    %99 = vector.load %arg4[%c0_36, %c0_37] : memref<32x32xbf16, #tpu.memory_space<vmem>>, vector<32x32xbf16>
    %cst_38 = arith.constant dense<0.000000e+00> : vector<8x32xf32>
    %100 = tpu.matmul %98, %99, %cst_38 {dimension_numbers = #tpu.dot_dimension_numbers<[1], [0], [0], [1], [0, 0, 1, 1], [], []>} : vector<8x32xbf16>, vector<32x32xbf16>, vector<8x32xf32> -> vector<8x32xf32>
    %101 = vector.broadcast %3 : vector<1x32xf32> to vector<8x32xf32>
    %102 = arith.addf %100, %101 : vector<8x32xf32>
    %103 = arith.addf %1, %102 : vector<8x32xf32>
    %cst_39 = arith.constant dense<0.000000e+00> : vector<8xf32>
    %104 = vector.multi_reduction <add>, %103, %cst_39 [1] : vector<8x32xf32> to vector<8xf32>
    %105 = vector.shape_cast %104 : vector<8xf32> to vector<8x1xf32>
    %cst_40 = arith.constant 3.200000e+01 : f32
    %106 = vector.broadcast %cst_40 : f32 to vector<8x1xf32>
    %107 = arith.divf %105, %106 : vector<8x1xf32>
    %108 = arith.mulf %103, %103 : vector<8x32xf32>
    %cst_41 = arith.constant dense<0.000000e+00> : vector<8xf32>
    %109 = vector.multi_reduction <add>, %108, %cst_41 [1] : vector<8x32xf32> to vector<8xf32>
    %110 = vector.shape_cast %109 : vector<8xf32> to vector<8x1xf32>
    %cst_42 = arith.constant 3.200000e+01 : f32
    %111 = vector.broadcast %cst_42 : f32 to vector<8x1xf32>
    %112 = arith.divf %110, %111 : vector<8x1xf32>
    %113 = arith.mulf %107, %107 : vector<8x1xf32>
    %114 = arith.subf %112, %113 : vector<8x1xf32>
    %cst_43 = arith.constant 0.000000e+00 : f32
    %115 = vector.broadcast %cst_43 : f32 to vector<8x1xf32>
    %116 = arith.maximumf %114, %115 : vector<8x1xf32>
    %117 = vector.broadcast %107 : vector<8x1xf32> to vector<8x32xf32>
    %118 = arith.subf %103, %117 : vector<8x32xf32>
    %cst_44 = arith.constant 9.99999974E-6 : f32
    %119 = vector.broadcast %cst_44 : f32 to vector<8x1xf32>
    %120 = arith.addf %116, %119 : vector<8x1xf32>
    %121 = math.rsqrt %120 : vector<8x1xf32>
    %122 = vector.broadcast %121 : vector<8x1xf32> to vector<8x32xf32>
    %123 = arith.mulf %118, %122 : vector<8x32xf32>
    %124 = vector.broadcast %4 : vector<1x32xf32> to vector<8x32xf32>
    %125 = arith.mulf %123, %124 : vector<8x32xf32>
    %126 = vector.broadcast %5 : vector<1x32xf32> to vector<8x32xf32>
    %127 = arith.addf %125, %126 : vector<8x32xf32>
    %128 = arith.truncf %127 : vector<8x32xf32> to vector<8x32xbf16>
    %c0_45 = arith.constant 0 : index
    %c0_46 = arith.constant 0 : index
    %129 = vector.load %arg5[%c0_45, %c0_46] : memref<32x64xbf16, #tpu.memory_space<vmem>>, vector<32x64xbf16>
    %cst_47 = arith.constant dense<0.000000e+00> : vector<8x64xf32>
    %130 = tpu.matmul %128, %129, %cst_47 {dimension_numbers = #tpu.dot_dimension_numbers<[1], [0], [0], [1], [0, 0, 1, 1], [], []>} : vector<8x32xbf16>, vector<32x64xbf16>, vector<8x64xf32> -> vector<8x64xf32>
    %c0_48 = arith.constant 0 : index
    %c0_49 = arith.constant 0 : index
    %131 = vector.load %arg6[%c0_48, %c0_49] : memref<1x64xf32, #tpu.memory_space<vmem>>, vector<1x64xf32>
    %132 = vector.broadcast %131 : vector<1x64xf32> to vector<8x64xf32>
    %133 = arith.addf %130, %132 : vector<8x64xf32>
    %cst_50 = arith.constant 0.000000e+00 : f32
    %134 = vector.broadcast %cst_50 : f32 to vector<8x64xf32>
    %135 = arith.maximumf %133, %134 : vector<8x64xf32>
    %136 = arith.truncf %135 : vector<8x64xf32> to vector<8x64xbf16>
    %c0_51 = arith.constant 0 : index
    %c0_52 = arith.constant 0 : index
    %137 = vector.load %arg7[%c0_51, %c0_52] : memref<64x32xbf16, #tpu.memory_space<vmem>>, vector<64x32xbf16>
    %cst_53 = arith.constant dense<0.000000e+00> : vector<8x32xf32>
    %138 = tpu.matmul %136, %137, %cst_53 {dimension_numbers = #tpu.dot_dimension_numbers<[1], [0], [0], [1], [0, 0, 1, 1], [], []>} : vector<8x64xbf16>, vector<64x32xbf16>, vector<8x32xf32> -> vector<8x32xf32>
    %139 = vector.broadcast %6 : vector<1x32xf32> to vector<8x32xf32>
    %140 = arith.addf %138, %139 : vector<8x32xf32>
    %141 = arith.addf %127, %140 : vector<8x32xf32>
    %cst_54 = arith.constant dense<0.000000e+00> : vector<8xf32>
    %142 = vector.multi_reduction <add>, %141, %cst_54 [1] : vector<8x32xf32> to vector<8xf32>
    %143 = vector.shape_cast %142 : vector<8xf32> to vector<8x1xf32>
    %cst_55 = arith.constant 3.200000e+01 : f32
    %144 = vector.broadcast %cst_55 : f32 to vector<8x1xf32>
    %145 = arith.divf %143, %144 : vector<8x1xf32>
    %146 = arith.mulf %141, %141 : vector<8x32xf32>
    %cst_56 = arith.constant dense<0.000000e+00> : vector<8xf32>
    %147 = vector.multi_reduction <add>, %146, %cst_56 [1] : vector<8x32xf32> to vector<8xf32>
    %148 = vector.shape_cast %147 : vector<8xf32> to vector<8x1xf32>
    %cst_57 = arith.constant 3.200000e+01 : f32
    %149 = vector.broadcast %cst_57 : f32 to vector<8x1xf32>
    %150 = arith.divf %148, %149 : vector<8x1xf32>
    %151 = arith.mulf %145, %145 : vector<8x1xf32>
    %152 = arith.subf %150, %151 : vector<8x1xf32>
    %cst_58 = arith.constant 0.000000e+00 : f32
    %153 = vector.broadcast %cst_58 : f32 to vector<8x1xf32>
    %154 = arith.maximumf %152, %153 : vector<8x1xf32>
    %155 = vector.broadcast %145 : vector<8x1xf32> to vector<8x32xf32>
    %156 = arith.subf %141, %155 : vector<8x32xf32>
    %cst_59 = arith.constant 9.99999974E-6 : f32
    %157 = vector.broadcast %cst_59 : f32 to vector<8x1xf32>
    %158 = arith.addf %154, %157 : vector<8x1xf32>
    %159 = math.rsqrt %158 : vector<8x1xf32>
    %160 = vector.broadcast %159 : vector<8x1xf32> to vector<8x32xf32>
    %161 = arith.mulf %156, %160 : vector<8x32xf32>
    %162 = vector.broadcast %7 : vector<1x32xf32> to vector<8x32xf32>
    %163 = arith.mulf %161, %162 : vector<8x32xf32>
    %164 = vector.broadcast %8 : vector<1x32xf32> to vector<8x32xf32>
    %165 = arith.addf %163, %164 : vector<8x32xf32>
    %166 = vector.shape_cast %165 : vector<8x32xf32> to vector<1x8x32xf32>
    %c0_60 = arith.constant 0 : index
    %c0_61 = arith.constant 0 : index
    %c0_62 = arith.constant 0 : index
    %167 = vector.load %arg9[%c0_60, %c0_61, %c0_62] : memref<1x8x32xf32, #tpu.memory_space<vmem>>, vector<1x8x32xf32>
    tpu.vector_store %arg9[%c0_60, %c0_61, %c0_62], %166 {strides = array<i32>} : memref<1x8x32xf32, #tpu.memory_space<vmem>>, vector<1x8x32xf32>,
    return
  }
  func.func @transform_0(%arg0: i32) -> (i32, i32, i32) {
    %c0_i32 = arith.constant 0 : i32
    %c0_i32_0 = arith.constant 0 : i32
    %c0_i32_1 = arith.constant 0 : i32
    return %arg0, %c0_i32, %c0_i32_0 : i32, i32, i32
  }
  func.func @transform_1(%arg0: i32) -> (i32, i32) {
    %c0_i32 = arith.constant 0 : i32
    %c0_i32_0 = arith.constant 0 : i32
    %c0_i32_1 = arith.constant 0 : i32
    return %c0_i32, %c0_i32_0 : i32, i32
  }
  func.func @transform_2(%arg0: i32) -> (i32, i32) {
    %c0_i32 = arith.constant 0 : i32
    %c0_i32_0 = arith.constant 0 : i32
    %c0_i32_1 = arith.constant 0 : i32
    return %c0_i32, %c0_i32_0 : i32, i32
  }
  func.func @transform_3(%arg0: i32) -> (i32, i32) {
    %c0_i32 = arith.constant 0 : i32
    %c0_i32_0 = arith.constant 0 : i32
    %c0_i32_1 = arith.constant 0 : i32
    return %c0_i32, %c0_i32_0 : i32, i32
  }
  func.func @transform_4(%arg0: i32) -> (i32, i32) {
    %c0_i32 = arith.constant 0 : i32
    %c0_i32_0 = arith.constant 0 : i32
    %c0_i32_1 = arith.constant 0 : i32
    return %c0_i32, %c0_i32_0 : i32, i32
  }
  func.func @transform_5(%arg0: i32) -> (i32, i32) {
    %c0_i32 = arith.constant 0 : i32
    %c0_i32_0 = arith.constant 0 : i32
    %c0_i32_1 = arith.constant 0 : i32
    return %c0_i32, %c0_i32_0 : i32, i32
  }
  func.func @transform_6(%arg0: i32) -> (i32, i32) {
    %c0_i32 = arith.constant 0 : i32
    %c0_i32_0 = arith.constant 0 : i32
    %c0_i32_1 = arith.constant 0 : i32
    return %c0_i32, %c0_i32_0 : i32, i32
  }
  func.func @transform_7(%arg0: i32) -> (i32, i32) {
    %c0_i32 = arith.constant 0 : i32
    %c0_i32_0 = arith.constant 0 : i32
    %c0_i32_1 = arith.constant 0 : i32
    return %c0_i32, %c0_i32_0 : i32, i32
  }
  func.func @transform_8(%arg0: i32) -> (i32, i32, i32) {
    %c0_i32 = arith.constant 0 : i32
    %c0_i32_0 = arith.constant 0 : i32
    %c0_i32_1 = arith.constant 0 : i32
    return %arg0, %c0_i32, %c0_i32_0 : i32, i32, i32
  }
}

</mosaic_0001>

<llo_original>
// kernel: tpu_custom_call.1
$region0: #{tpu_custom_call.1}
  #allocation0 [shape = 'u32[]', space=smem, size = 0x4, offset = 0x4, fixed_abs, tag = 'smem constant byte address 0x4 - core index']
  #allocation1 [shape = 'u32[144,128]{1,0:T(1,128)}', space=vmem, size = 0x12000, scoped, tag = 'internal scratch']
  #allocation2 [shape = 'f32[1,8,32]{2,1,0:T(8,128)}', space=vmem, size = 0x1000, scoped, tag = 'scratch operand']
  %s0 = inlined_call_operand.vmem [shape: f32[2,8,32], index: 0, kind: input, shape index: {}]
  %s1 = inlined_call_operand.vmem [shape: bf16[32,96], index: 1, kind: input, shape index: {}]
  %s2 = inlined_call_operand.vmem [shape: f32[1,96], index: 2, kind: input, shape index: {}]
  %s3 = inlined_call_operand.vmem [shape: bf16[32,32], index: 3, kind: input, shape index: {}]
  %s4 = inlined_call_operand.hbm [shape: bf16[32,64], index: 4, kind: input, shape index: {}]
  %s5 = inlined_call_operand.hbm [shape: f32[1,64], index: 5, kind: input, shape index: {}]
  %s6 = inlined_call_operand.vmem [shape: bf16[64,32], index: 6, kind: input, shape index: {}]
  %s7 = inlined_call_operand.vmem [shape: f32[6,32], index: 7, kind: input, shape index: {}]
  %s8 = inlined_call_operand.hbm [shape: f32[2,8,32], index: 8, kind: output, shape index: {}]
  %s9 = sld [smem:[#allocation0]]
  $region73: #{tpu_custom_call.1} parent=0
    _
  %s11 = ssub.s32 1, %s9
  %s12 = scalar_select 0, %s11, %s9
  $region1: #{tpu_custom_call.1} parent=0
    #allocation3 [shape = 'u8[8192]{0}', space=vmem, size = 0x2000, scoped, tag = 'input window, operand 4, single buffered']
    #allocation4 [shape = 's32[2]{0}', space=sflag, size = 0x8, scoped, tag = 'scoped memory for tpu_custom_call.1']
    #allocation5 [shape = 's32[2]{0}', space=sflag, size = 0x8, scoped, tag = 'scoped memory for tpu_custom_call.1']
    #allocation6 [shape = 'u8[512]{0}', space=vmem, size = 0x400, scoped, tag = 'input window, operand 5, single buffered']
    #allocation7 [shape = 's32[1]{0}', space=sflag, size = 0x4, scoped, tag = 'scoped memory for tpu_custom_call.1']
    #allocation8 [shape = 'u8[8192]{0}', space=vmem, size = 0x2000, scoped, tag = 'output window, operand 0']
    %13 = vsyncpa [#allocation4], 0
    %14 = vsyncpa [#allocation7], 0
    %15 = vsyncpa [#allocation5], 0
    %s16 = scalar_lea.sflag [#allocation5], 1
    %17 = vsyncpa %s16, 0
    loop: start=0, step=1, limit=4
    $region2: #{tpu_custom_call.1} parent=1 // loop_pre_header
      _
    $region3: #{tpu_custom_call.1} parent=1 // loop_header
      %s19 = sphi 0, %s23
      %p20 = scmp.ge.s32.totalorder %s19, 4
      %s29 = sphi 0, %s31
      %s32 = sphi 0, %s29
      %s33 = sphi 0, %s32
      %s49 = sphi 0, %s33
      %s53 = sphi 0, %s53
      %s55 = sphi 0, %s53
      %s56 = sphi 0, %s55
      %s70 = sphi 0, %s56
      %s74 = sphi 0, %s74
      %s76 = sphi 0, %s74
      %s77 = sphi 0, %s76
      %s91 = sphi 0, %s77
      %s95 = sphi 0, %s95
      %s97 = sphi 0, %s95
      %s98 = sphi 0, %s97
      %s112 = sphi 0, %s98
      %s116 = sphi 0, %s116
      %s118 = sphi 0, %s116
      %s119 = sphi 0, %s118
      %s133 = sphi 0, %s119
      %s137 = sphi 0, %s137
      %s139 = sphi 0, %s137
      %s140 = sphi 0, %s139
      %s154 = sphi 0, %s140
      %s158 = sphi 0, %s158
      %s160 = sphi 0, %s158
      %s161 = sphi 0, %s160
      %s175 = sphi 0, %s161
      %s179 = sphi 0, %s179
      %s181 = sphi 0, %s179
      %s182 = sphi 0, %s181
      %s196 = sphi 0, %s182
      %s202 = sphi 0, %s204
      %s205 = sphi 0, %s202
      %s206 = sphi 0, %s205
      %s222 = sphi 0, %s206
    $region4: #{tpu_custom_call.1} parent=1 // loop_header_branch
      %22 = sbr.rel (%p20) target = $region8
    $region5: #{tpu_custom_call.1} parent=1 // loop_body
      %s24 = ssub.s32 %s19, 1
      %s25 = ssub.s32 %s19, 2
      %s26 = sadd.s32 %s19, 1
      %s27 = ssub.s32 %s19, %s26
      %p28 = scmp.eq.s32.totalorder %s27, 0
      %s30 = sadd.s32 %s29, 1
      %s31 = scalar_select %p28, %s29, %s30
      %p34 = pneg %p28
      %p35 = scmp.eq.s32.totalorder %s19, 1
      %p36 = por %p34, %p35
      %p37 = scmp.ne.s32.totalorder %s29, %s32
      %p38 = scmp.eq.s32.totalorder %s19, 0
      %p39 = por %p37, %p38
      %p40 = scmp.ne.s32.totalorder %s29, %s32
      %p41 = scmp.eq.s32.totalorder %s24, 1
      %p42 = por %p40, %p41
      %p43 = scmp.ne.s32.totalorder %s32, %s33
      %p44 = scmp.eq.s32.totalorder %s24, 0
      %p45 = por %p43, %p44
      %p46 = scmp.ne.s32.totalorder %s32, %s33
      %p47 = scmp.eq.s32.totalorder %s25, 1
      %p48 = por %p46, %p47
      %p50 = scmp.ne.s32.totalorder %s33, %s49
      %p51 = scmp.eq.s32.totalorder %s25, 0
      %p52 = por %p50, %p51
      %s54 = sadd.s32 %s53, 1
      %p57 = scmp.eq.s32.totalorder %s19, 1
      %p58 = scmp.ne.s32.totalorder %s53, %s55
      %p59 = scmp.eq.s32.totalorder %s19, 0
      %p60 = por %p58, %p59
      %p61 = scmp.ne.s32.totalorder %s53, %s55
      %p62 = scmp.eq.s32.totalorder %s24, 1
      %p63 = por %p61, %p62
      %p64 = scmp.ne.s32.totalorder %s55, %s56
      %p65 = scmp.eq.s32.totalorder %s24, 0
      %p66 = por %p64, %p65
      %p67 = scmp.ne.s32.totalorder %s55, %s56
      %p68 = scmp.eq.s32.totalorder %s25, 1
      %p69 = por %p67, %p68
      %p71 = scmp.ne.s32.totalorder %s56, %s70
      %p72 = scmp.eq.s32.totalorder %s25, 0
      %p73 = por %p71, %p72
      %s75 = sadd.s32 %s74, 1
      %p78 = scmp.eq.s32.totalorder %s19, 1
      %p79 = scmp.ne.s32.totalorder %s74, %s76
      %p80 = scmp.eq.s32.totalorder %s19, 0
      %p81 = por %p79, %p80
      %p82 = scmp.ne.s32.totalorder %s74, %s76
      %p83 = scmp.eq.s32.totalorder %s24, 1
      %p84 = por %p82, %p83
      %p85 = scmp.ne.s32.totalorder %s76, %s77
      %p86 = scmp.eq.s32.totalorder %s24, 0
      %p87 = por %p85, %p86
      %p88 = scmp.ne.s32.totalorder %s76, %s77
      %p89 = scmp.eq.s32.totalorder %s25, 1
      %p90 = por %p88, %p89
      %p92 = scmp.ne.s32.totalorder %s77, %s91
      %p93 = scmp.eq.s32.totalorder %s25, 0
      %p94 = por %p92, %p93
      %s96 = sadd.s32 %s95, 1
      %p99 = scmp.eq.s32.totalorder %s19, 1
      %p100 = scmp.ne.s32.totalorder %s95, %s97
      %p101 = scmp.eq.s32.totalorder %s19, 0
      %p102 = por %p100, %p101
      %p103 = scmp.ne.s32.totalorder %s95, %s97
      %p104 = scmp.eq.s32.totalorder %s24, 1
      %p105 = por %p103, %p104
      %p106 = scmp.ne.s32.totalorder %s97, %s98
      %p107 = scmp.eq.s32.totalorder %s24, 0
      %p108 = por %p106, %p107
      %p109 = scmp.ne.s32.totalorder %s97, %s98
      %p110 = scmp.eq.s32.totalorder %s25, 1
      %p111 = por %p109, %p110
      %p113 = scmp.ne.s32.totalorder %s98, %s112
      %p114 = scmp.eq.s32.totalorder %s25, 0
      %p115 = por %p113, %p114
      %s117 = sadd.s32 %s116, 1
      %p120 = scmp.eq.s32.totalorder %s19, 1
      %p121 = scmp.ne.s32.totalorder %s116, %s118
      %p122 = scmp.eq.s32.totalorder %s19, 0
      %p123 = por %p121, %p122
      %p124 = scmp.ne.s32.totalorder %s116, %s118
      %p125 = scmp.eq.s32.totalorder %s24, 1
      %p126 = por %p124, %p125
      %p127 = scmp.ne.s32.totalorder %s118, %s119
      %p128 = scmp.eq.s32.totalorder %s24, 0
      %p129 = por %p127, %p128
      %p130 = scmp.ne.s32.totalorder %s118, %s119
      %p131 = scmp.eq.s32.totalorder %s25, 1
      %p132 = por %p130, %p131
      %p134 = scmp.ne.s32.totalorder %s119, %s133
      %p135 = scmp.eq.s32.totalorder %s25, 0
      %p136 = por %p134, %p135
      %s138 = sadd.s32 %s137, 1
      %p141 = scmp.eq.s32.totalorder %s19, 1
      %p142 = scmp.ne.s32.totalorder %s137, %s139
      %p143 = scmp.eq.s32.totalorder %s19, 0
      %p144 = por %p142, %p143
      %p145 = scmp.ne.s32.totalorder %s137, %s139
      %p146 = scmp.eq.s32.totalorder %s24, 1
      %p147 = por %p145, %p146
      %p148 = scmp.ne.s32.totalorder %s139, %s140
      %p149 = scmp.eq.s32.totalorder %s24, 0
      %p150 = por %p148, %p149
      %p151 = scmp.ne.s32.totalorder %s139, %s140
      %p152 = scmp.eq.s32.totalorder %s25, 1
      %p153 = por %p151, %p152
      %p155 = scmp.ne.s32.totalorder %s140, %s154
      %p156 = scmp.eq.s32.totalorder %s25, 0
      %p157 = por %p155, %p156
      %s159 = sadd.s32 %s158, 1
      %p162 = scmp.eq.s32.totalorder %s19, 1
      %p163 = scmp.ne.s32.totalorder %s158, %s160
      %p164 = scmp.eq.s32.totalorder %s19, 0
      %p165 = por %p163, %p164
      %p166 = scmp.ne.s32.totalorder %s158, %s160
      %p167 = scmp.eq.s32.totalorder %s24, 1
      %p168 = por %p166, %p167
      %p169 = scmp.ne.s32.totalorder %s160, %s161
      %p170 = scmp.eq.s32.totalorder %s24, 0
      %p171 = por %p169, %p170
      %p172 = scmp.ne.s32.totalorder %s160, %s161
      %p173 = scmp.eq.s32.totalorder %s25, 1
      %p174 = por %p172, %p173
      %p176 = scmp.ne.s32.totalorder %s161, %s175
      %p177 = scmp.eq.s32.totalorder %s25, 0
      %p178 = por %p176, %p177
      %s180 = sadd.s32 %s179, 1
      %p183 = scmp.eq.s32.totalorder %s19, 1
      %p184 = scmp.ne.s32.totalorder %s179, %s181
      %p185 = scmp.eq.s32.totalorder %s19, 0
      %p186 = por %p184, %p185
      %p187 = scmp.ne.s32.totalorder %s179, %s181
      %p188 = scmp.eq.s32.totalorder %s24, 1
      %p189 = por %p187, %p188
      %p190 = scmp.ne.s32.totalorder %s181, %s182
      %p191 = scmp.eq.s32.totalorder %s24, 0
      %p192 = por %p190, %p191
      %p193 = scmp.ne.s32.totalorder %s181, %s182
      %p194 = scmp.eq.s32.totalorder %s25, 1
      %p195 = por %p193, %p194
      %p197 = scmp.ne.s32.totalorder %s182, %s196
      %p198 = scmp.eq.s32.totalorder %s25, 0
      %p199 = por %p197, %p198
      %s200 = ssub.s32 %s19, %s26
      %p201 = scmp.eq.s32.totalorder %s200, 0
      %s203 = sadd.s32 %s202, 1
      %s204 = scalar_select %p201, %s202, %s203
      %p207 = pneg %p201
      %p208 = scmp.eq.s32.totalorder %s19, 1
      %p209 = por %p207, %p208
      %p210 = scmp.ne.s32.totalorder %s202, %s205
      %p211 = scmp.eq.s32.totalorder %s19, 0
      %p212 = por %p210, %p211
      %p213 = scmp.ne.s32.totalorder %s202, %s205
      %p214 = scmp.eq.s32.totalorder %s24, 1
      %p215 = por %p213, %p214
      %p216 = scmp.ne.s32.totalorder %s205, %s206
      %p217 = scmp.eq.s32.totalorder %s24, 0
      %p218 = por %p216, %p217
      %p219 = scmp.ne.s32.totalorder %s205, %s206
      %p220 = scmp.eq.s32.totalorder %s25, 1
      %p221 = por %p219, %p220
      %p223 = scmp.ne.s32.totalorder %s206, %s222
      %p224 = scmp.eq.s32.totalorder %s25, 0
      %p225 = por %p223, %p224
      %p226 = scmp.le.s32.totalorder 1, %s19
      %p227 = scmp.lt.s32.totalorder %s19, 3
      %p228 = pnand %p226, %p227
      %p229 = pneg %p228
      // Predicated region
      $region9: #{tpu_custom_call.1} parent=5 // pred_check
        _
      $region10: #{tpu_custom_call.1} parent=5 // pred_check_branch
        %231 = sbr.rel (%p228) target = $region12
      $region11: #{tpu_custom_call.1} parent=5 // pred_region
        %s232 = ssub.s32 %s19, 1
        // Predicated region
        $region13: #{tpu_custom_call.1} parent=11 // pred_check
          %p233 = pneg %p66
        $region14: #{tpu_custom_call.1} parent=11 // pred_check_branch
          %235 = sbr.rel (%p233) target = $region16
        $region15: #{tpu_custom_call.1} parent=11 // pred_region
          _
        $region16: #{tpu_custom_call.1} parent=11 // pred_fallthru
          _
        // Predicated region
        $region17: #{tpu_custom_call.1} parent=11 // pred_check
          %p236 = pneg %p87
        $region18: #{tpu_custom_call.1} parent=11 // pred_check_branch
          %238 = sbr.rel (%p236) target = $region20
        $region19: #{tpu_custom_call.1} parent=11 // pred_region
          _
        $region20: #{tpu_custom_call.1} parent=11 // pred_fallthru
          _
        // Predicated region
        $region21: #{tpu_custom_call.1} parent=11 // pred_check
          %p239 = pneg %p108
        $region22: #{tpu_custom_call.1} parent=11 // pred_check_branch
          %241 = sbr.rel (%p239) target = $region24
        $region23: #{tpu_custom_call.1} parent=11 // pred_region
          _
        $region24: #{tpu_custom_call.1} parent=11 // pred_fallthru
          _
        // Predicated region
        $region25: #{tpu_custom_call.1} parent=11 // pred_check
          %p242 = pneg %p129
        $region26: #{tpu_custom_call.1} parent=11 // pred_check_branch
          %244 = sbr.rel (%p242) target = $region28
        $region27: #{tpu_custom_call.1} parent=11 // pred_region
          %s246 = ssub.s32 256, 256
          %247 = vsyncadd [#allocation4], %s246
          %s248 = sshll.u32 [#allocation3], 4
          %s249 = int_to_ptr.vmem [resolvable:$true] %s248
          %254 = dma.hbm_to_vmem [thread:$0]  %s4, 256, %s249, [#allocation4], 64, 64, 4
        $region28: #{tpu_custom_call.1} parent=11 // pred_fallthru
          _
        // Predicated region
        $region29: #{tpu_custom_call.1} parent=11 // pred_check
          %p255 = pneg %p150
        $region30: #{tpu_custom_call.1} parent=11 // pred_check_branch
          %257 = sbr.rel (%p255) target = $region32
        $region31: #{tpu_custom_call.1} parent=11 // pred_region
          %s259 = ssub.s32 16, 16
          %260 = vsyncadd [#allocation7], %s259
          %s262 = sshll.u32 [#allocation6], 4
          %s263 = int_to_ptr.vmem [resolvable:$true] %s262
          %265 = dma.hbm_to_vmem [thread:$0]  %s5, 16, %s263, [#allocation7]
        $region32: #{tpu_custom_call.1} parent=11 // pred_fallthru
          _
        // Predicated region
        $region33: #{tpu_custom_call.1} parent=11 // pred_check
          %p266 = pneg %p171
        $region34: #{tpu_custom_call.1} parent=11 // pred_check_branch
          %268 = sbr.rel (%p266) target = $region36
        $region35: #{tpu_custom_call.1} parent=11 // pred_region
          _
        $region36: #{tpu_custom_call.1} parent=11 // pred_fallthru
          _
        // Predicated region
        $region37: #{tpu_custom_call.1} parent=11 // pred_check
          %p269 = pneg %p192
        $region38: #{tpu_custom_call.1} parent=11 // pred_check_branch
          %271 = sbr.rel (%p269) target = $region40
        $region39: #{tpu_custom_call.1} parent=11 // pred_region
          _
        $region40: #{tpu_custom_call.1} parent=11 // pred_fallthru
          _
      $region12: #{tpu_custom_call.1} parent=5 // pred_fallthru
        _
      %p272 = scmp.lt.s32.totalorder %s19, 2
      // Predicated region
      $region41: #{tpu_custom_call.1} parent=5 // pred_check
        %p273 = pneg %p272
      $region42: #{tpu_custom_call.1} parent=5 // pred_check_branch
        %275 = sbr.rel (%p273) target = $region44
      $region43: #{tpu_custom_call.1} parent=5 // pred_region
        // Predicated region
        $region45: #{tpu_custom_call.1} parent=43 // pred_check
          %p276 = pneg %p39
        $region46: #{tpu_custom_call.1} parent=43 // pred_check_branch
          %278 = sbr.rel (%p276) target = $region48
        $region47: #{tpu_custom_call.1} parent=43 // pred_region
          %p279 = scmp.lt.s32.totalorder %s19, 1
          %s280 = scalar_select %p279, %s19, 1
          %s281 = smul.addr %s280, 8
          %s282 = scalar_lea.vmem %s0, %s281
        $region48: #{tpu_custom_call.1} parent=43 // pred_fallthru
          _
      $region44: #{tpu_custom_call.1} parent=5 // pred_fallthru
        _
      %p283 = scmp.le.s32.totalorder 1, %s19
      %p284 = scmp.lt.s32.totalorder %s19, 3
      %p285 = pnand %p283, %p284
      %p286 = pneg %p285
      // Predicated region
      $region49: #{tpu_custom_call.1} parent=5 // pred_check
        _
      $region50: #{tpu_custom_call.1} parent=5 // pred_check_branch
        %288 = sbr.rel (%p285) target = $region52
      $region51: #{tpu_custom_call.1} parent=5 // pred_region
        %s289 = ssub.s32 %s19, 1
        // Predicated region
        $region53: #{tpu_custom_call.1} parent=51 // pred_check
          %p290 = pneg %p129
        $region54: #{tpu_custom_call.1} parent=51 // pred_check_branch
          %292 = sbr.rel (%p290) target = $region56
        $region55: #{tpu_custom_call.1} parent=51 // pred_region
          %293 = dma.done [#allocation4], 256
        $region56: #{tpu_custom_call.1} parent=51 // pred_fallthru
          _
        // Predicated region
        $region57: #{tpu_custom_call.1} parent=51 // pred_check
          %p294 = pneg %p150
        $region58: #{tpu_custom_call.1} parent=51 // pred_check_branch
          %296 = sbr.rel (%p294) target = $region60
        $region59: #{tpu_custom_call.1} parent=51 // pred_region
          %297 = dma.done [#allocation7], 16
        $region60: #{tpu_custom_call.1} parent=51 // pred_fallthru
          _
        %p298 = scmp.lt.s32.totalorder %s24, 1
        %s299 = scalar_select %p298, %s24, 1
        %s300 = smul.addr %s299, 8
        %s301 = scalar_lea.vmem %s0, %s300
        %p302 = pneg %p45
        %p303 = pneg %p42
        %p304 = pneg %p66
        %p305 = pneg %p63
        %p306 = pneg %p87
        %p307 = pneg %p84
        %p308 = pneg %p108
        %p309 = pneg %p105
        %p310 = pneg %p129
        %p311 = pneg %p126
        %p312 = pneg %p150
        %p313 = pneg %p147
        %p314 = pneg %p171
        %p315 = pneg %p168
        %p316 = pneg %p192
        %p317 = pneg %p189
        %p318 = pneg %p218
        %p319 = pneg %p215
        %s320 = sand.u32 %s205, 1
        %s321 = scalar_lea.sflag [#allocation5], %s320
        %s322 = sand.u32 %s205, 1
        %s323 = smul.addr %s322, 8
        %s324 = scalar_lea.vmem [#allocation8], %s323
        %p325 = scmp.lt.s32.totalorder %s24, 1
        %s326 = scalar_select %p325, %s24, 1
        %s327 = smul.addr %s326, 8
        %s328 = scalar_lea.vmem %s0, %s327
        %v330 = vld [vmem:[%s328] sm:$0xff]
        %v331 = vld [vmem:[%s7] sm:$0x3f]
        %v332 = vpack.c.bf16 %v330, %v330
        %v333 = vld [vmem:[%s1] sm:$0xf]
        %v334 = vld [vmem:[%s1 + $0x4] sm:$0xf]
        %v335 = vld [vmem:[%s1 + $0x8] sm:$0xf]
        %v336 = vld [vmem:[%s1 + $0xc] sm:$0xf]
        %v337 = vld [vmem:[%s2] sm:$0x1]
        %v339 = vlaneseq
        %v340 = vshrl.u32 %v339, 7
        %v341 = vsub.s32 0, %v340
        %v342 = vrot.slane %v337, %v341
        %v348 = vunpack.c.l.b16 %v333
        %v349 = vunpack.c.l.b16 %v334
        %v350 = vunpack.c.l.b16 %v335
        %v351 = vunpack.c.l.b16 %v336
        %v352 = vpack.c.b16 %v349, %v348
        %v353 = vpack.c.b16 %v351, %v350
        %vm356 = vcmask 261120
        %v358 = vsel %vm356, %v332, 0
        %360 = vmatprep.subr.bf16.mxu0 0
        %361 = vmatpush1.bf16.msra.mxu0 0
        %362 = vmatprep.subr.bf16.mxu0 0
        %363 = vmatpush1.bf16.msra.mxu0 0
        %364 = vmatprep.subr.bf16.mxu0 0
        %365 = vmatpush1.bf16.msra.mxu0 0
        %366 = vmatprep.subr.bf16.mxu0 0
        %367 = vmatpush1.bf16.msra.mxu0 0
        %368 = vmatprep.subr.bf16.mxu0 0
        %369 = vmatpush1.bf16.msra.mxu0 0
        %370 = vmatprep.subr.bf16.mxu0 0
        %371 = vmatpush1.bf16.msra.mxu0 0
        %372 = vmatprep.subr.bf16.mxu0 0
        %373 = vmatpush1.bf16.msra.mxu0 %v353
        %374 = vmatprep.subr.bf16.mxu0 0
        %375 = vmatpush1.bf16.msra.mxu0 %v352
        %376 = vmatprep.subr.bf16.mxu0 0
        %377 = vmatpush2.bf16.msra.mxu0 0
        %378 = vmatprep.subr.bf16.mxu0 0
        %379 = vmatpush2.bf16.msra.mxu0 0
        %380 = vmatprep.subr.bf16.mxu0 0
        %381 = vmatpush2.bf16.msra.mxu0 0
        %382 = vmatprep.subr.bf16.mxu0 0
        %383 = vmatpush2.bf16.msra.mxu0 0
        %384 = vmatprep.subr.bf16.mxu0 0
        %385 = vmatpush2.bf16.msra.mxu0 0
        %386 = vmatprep.subr.bf16.mxu0 0
        %387 = vmatpush2.bf16.msra.mxu0 0
        %388 = vmatprep.subr.bf16.mxu0 0
        %389 = vmatpush2.bf16.msra.mxu0 0
        %390 = vmatprep.subr.bf16.mxu0 0
        %391 = vmatpush2.bf16.msra.mxu0 0
        %392 = vmatprep.mubr.bf16.mxu0 0
        %393 = vmatmul.mubr.bf16.gmra.mxu0 %v358
        %v394 = vpop.f32.mrf.mxu0
        %v395 = vadd.f32 %v342, %v394
        %v396 = vpop.f32.mrf.mxu0
        %v397 = vpop.f32.mrf.mxu0
        %v398 = vpop.f32.mrf.mxu0
        %399 = vdwg.mxu0
        %v400 = vpack.c.bf16 %v395, %v395
        %402 = vrot.lane.b32.xlu0 %v400, 96
        %v403 = vpop.permute.xlu0 %402
        %vm404 = vcmask 64512
        %v406 = vsel %vm404, %v400, 0
        %v409 = vsel %vm404, %v403, 0
        %411 = vmatprep.subr.bf16.mxu0 0
        %412 = vmatpush1.bf16.xpose.msra.mxu0 0
        %413 = vmatprep.subr.bf16.mxu0 0
        %414 = vmatpush1.bf16.xpose.msra.mxu0 0
        %415 = vmatprep.subr.bf16.mxu0 0
        %416 = vmatpush1.bf16.xpose.msra.mxu0 0
        %417 = vmatprep.subr.bf16.mxu0 0
        %418 = vmatpush1.bf16.xpose.msra.mxu0 0
        %419 = vmatprep.subr.bf16.mxu0 0
        %420 = vmatpush1.bf16.xpose.msra.mxu0 0
        %421 = vmatprep.subr.bf16.mxu0 0
        %422 = vmatpush1.bf16.xpose.msra.mxu0 0
        %423 = vmatprep.subr.bf16.mxu0 0
        %424 = vmatpush1.bf16.xpose.msra.mxu0 0
        %425 = vmatprep.subr.bf16.mxu0 0
        %426 = vmatpush1.bf16.xpose.msra.mxu0 %v409
        %427 = vmatprep.subr.bf16.mxu0 0
        %428 = vmatpush2.bf16.xpose.msra.mxu0 0
        %429 = vmatprep.subr.bf16.mxu0 0
        %430 = vmatpush2.bf16.xpose.msra.mxu0 0
        %431 = vmatprep.subr.bf16.mxu0 0
        %432 = vmatpush2.bf16.xpose.msra.mxu0 0
        %433 = vmatprep.subr.bf16.mxu0 0
        %434 = vmatpush2.bf16.xpose.msra.mxu0 0
        %435 = vmatprep.subr.bf16.mxu0 0
        %436 = vmatpush2.bf16.xpose.msra.mxu0 0
        %437 = vmatprep.subr.bf16.mxu0 0
        %438 = vmatpush2.bf16.xpose.msra.mxu0 0
        %439 = vmatprep.subr.bf16.mxu0 0
        %440 = vmatpush2.bf16.xpose.msra.mxu0 0
        %441 = vmatprep.subr.bf16.mxu0 0
        %442 = vmatpush2.bf16.xpose.msra.mxu0 0
        %443 = vmatprep.mubr.bf16.mxu0 0
        %444 = vmatmul.mubr.bf16.gmra.mxu0 %v406
        %v445 = vpop.f32.mrf.mxu0
        %v446 = vadd.f32 0.0, %v445
        %v447 = vpop.f32.mrf.mxu0
        %v448 = vpop.f32.mrf.mxu0
        %v449 = vpop.f32.mrf.mxu0
        %450 = vdwg.mxu0
        %v451 = vsel %vm404, %v446, -inf
        %452 = vmax.xlane.f32.xlu0 %v451
        %v453 = vpop.xlane.xlu0 %452
        %v454 = vsub.f32 %v446, %v453
        %v455 = vmul.f32 %v454, 1.442695
        %v456 = vpow.pop %v455
        %v457 = vsel %vm404, %v456, 0.0
        %458 = vadd.xlane.f32.xlu0 %v457
        %v459 = vpop.xlane.xlu0 %458
        %v460 = vrcp.pop %v459
        %v461 = vmul.f32 %v456, %v460
        %v462 = vpack.c.bf16 %v461, %v461
        %463 = vrot.lane.b32.xlu0 %v400, 64
        %v464 = vpop.permute.xlu0 %463
        %v466 = vsel %vm404, %v462, 0
        %vm468 = vcmask 1043456
        %v470 = vsel %vm468, %v464, 0
        %472 = vmatprep.subr.bf16.mxu0 0
        %473 = vmatpush1.bf16.msra.mxu0 0
        %474 = vmatprep.subr.bf16.mxu0 0
        %475 = vmatpush1.bf16.msra.mxu0 0
        %476 = vmatprep.subr.bf16.mxu0 0
        %477 = vmatpush1.bf16.msra.mxu0 0
        %478 = vmatprep.subr.bf16.mxu0 0
        %479 = vmatpush1.bf16.msra.mxu0 0
        %480 = vmatprep.subr.bf16.mxu0 0
        %481 = vmatpush1.bf16.msra.mxu0 0
        %482 = vmatprep.subr.bf16.mxu0 0
        %483 = vmatpush1.bf16.msra.mxu0 0
        %484 = vmatprep.subr.bf16.mxu0 0
        %485 = vmatpush1.bf16.msra.mxu0 0
        %486 = vmatprep.subr.bf16.mxu0 0
        %487 = vmatpush1.bf16.msra.mxu0 %v470
        %488 = vmatprep.subr.bf16.mxu0 0
        %489 = vmatpush2.bf16.msra.mxu0 0
        %490 = vmatprep.subr.bf16.mxu0 0
        %491 = vmatpush2.bf16.msra.mxu0 0
        %492 = vmatprep.subr.bf16.mxu0 0
        %493 = vmatpush2.bf16.msra.mxu0 0
        %494 = vmatprep.subr.bf16.mxu0 0
        %495 = vmatpush2.bf16.msra.mxu0 0
        %496 = vmatprep.subr.bf16.mxu0 0
        %497 = vmatpush2.bf16.msra.mxu0 0
        %498 = vmatprep.subr.bf16.mxu0 0
        %499 = vmatpush2.bf16.msra.mxu0 0
        %500 = vmatprep.subr.bf16.mxu0 0
        %501 = vmatpush2.bf16.msra.mxu0 0
        %502 = vmatprep.subr.bf16.mxu0 0
        %503 = vmatpush2.bf16.msra.mxu0 0
        %504 = vmatprep.mubr.bf16.mxu0 0
        %505 = vmatmul.mubr.bf16.gmra.mxu0 %v466
        %v506 = vpop.f32.mrf.mxu0
        %v507 = vadd.f32 0.0, %v506
        %v508 = vpop.f32.mrf.mxu0
        %v509 = vpop.f32.mrf.mxu0
        %v510 = vpop.f32.mrf.mxu0
        %511 = vdwg.mxu0
        %512 = vst.msk [vmem:[#allocation2] sm:$0xff] %vm404, %v507
        %513 = vrot.lane.b32.xlu0 %v400, 120
        %v514 = vpop.permute.xlu0 %513
        %515 = vrot.lane.b32.xlu0 %v400, 88
        %v516 = vpop.permute.xlu0 %515
        %v518 = vsel %vm404, %v514, 0
        %v521 = vsel %vm404, %v516, 0
        %523 = vmatprep.subr.bf16.mxu0 0
        %524 = vmatpush1.bf16.xpose.msra.mxu0 0
        %525 = vmatprep.subr.bf16.mxu0 0
        %526 = vmatpush1.bf16.xpose.msra.mxu0 0
        %527 = vmatprep.subr.bf16.mxu0 0
        %528 = vmatpush1.bf16.xpose.msra.mxu0 0
        %529 = vmatprep.subr.bf16.mxu0 0
        %530 = vmatpush1.bf16.xpose.msra.mxu0 0
        %531 = vmatprep.subr.bf16.mxu0 0
        %532 = vmatpush1.bf16.xpose.msra.mxu0 0
        %533 = vmatprep.subr.bf16.mxu0 0
        %534 = vmatpush1.bf16.xpose.msra.mxu0 0
        %535 = vmatprep.subr.bf16.mxu0 0
        %536 = vmatpush1.bf16.xpose.msra.mxu0 0
        %537 = vmatprep.subr.bf16.mxu0 0
        %538 = vmatpush1.bf16.xpose.msra.mxu0 %v521
        %539 = vmatprep.subr.bf16.mxu0 0
        %540 = vmatpush2.bf16.xpose.msra.mxu0 0
        %541 = vmatprep.subr.bf16.mxu0 0
        %542 = vmatpush2.bf16.xpose.msra.mxu0 0
        %543 = vmatprep.subr.bf16.mxu0 0
        %544 = vmatpush2.bf16.xpose.msra.mxu0 0
        %545 = vmatprep.subr.bf16.mxu0 0
        %546 = vmatpush2.bf16.xpose.msra.mxu0 0
        %547 = vmatprep.subr.bf16.mxu0 0
        %548 = vmatpush2.bf16.xpose.msra.mxu0 0
        %549 = vmatprep.subr.bf16.mxu0 0
        %550 = vmatpush2.bf16.xpose.msra.mxu0 0
        %551 = vmatprep.subr.bf16.mxu0 0
        %552 = vmatpush2.bf16.xpose.msra.mxu0 0
        %553 = vmatprep.subr.bf16.mxu0 0
        %554 = vmatpush2.bf16.xpose.msra.mxu0 0
        %555 = vmatprep.mubr.bf16.mxu0 0
        %556 = vmatmul.mubr.bf16.gmra.mxu0 %v518
        %v557 = vpop.f32.mrf.mxu0
        %v558 = vadd.f32 0.0, %v557
        %v559 = vpop.f32.mrf.mxu0
        %v560 = vpop.f32.mrf.mxu0
        %v561 = vpop.f32.mrf.mxu0
        %562 = vdwg.mxu0
        %v563 = vsel %vm404, %v558, -inf
        %564 = vmax.xlane.f32.xlu0 %v563
        %v565 = vpop.xlane.xlu0 %564
        %v566 = vsub.f32 %v558, %v565
        %v567 = vmul.f32 %v566, 1.442695
        %v568 = vpow.pop %v567
        %v569 = vsel %vm404, %v568, 0.0
        %570 = vadd.xlane.f32.xlu0 %v569
        %v571 = vpop.xlane.xlu0 %570
        %v572 = vrcp.pop %v571
        %v573 = vmul.f32 %v568, %v572
        %v574 = vpack.c.bf16 %v573, %v573
        %575 = vrot.lane.b32.xlu0 %v400, 56
        %v576 = vpop.permute.xlu0 %575
        %v578 = vsel %vm404, %v574, 0
        %v581 = vsel %vm468, %v576, 0
        %583 = vmatprep.subr.bf16.mxu0 0
        %584 = vmatpush1.bf16.msra.mxu0 0
        %585 = vmatprep.subr.bf16.mxu0 0
        %586 = vmatpush1.bf16.msra.mxu0 0
        %587 = vmatprep.subr.bf16.mxu0 0
        %588 = vmatpush1.bf16.msra.mxu0 0
        %589 = vmatprep.subr.bf16.mxu0 0
        %590 = vmatpush1.bf16.msra.mxu0 0
        %591 = vmatprep.subr.bf16.mxu0 0
        %592 = vmatpush1.bf16.msra.mxu0 0
        %593 = vmatprep.subr.bf16.mxu0 0
        %594 = vmatpush1.bf16.msra.mxu0 0
        %595 = vmatprep.subr.bf16.mxu0 0
        %596 = vmatpush1.bf16.msra.mxu0 0
        %597 = vmatprep.subr.bf16.mxu0 0
        %598 = vmatpush1.bf16.msra.mxu0 %v581
        %599 = vmatprep.subr.bf16.mxu0 0
        %600 = vmatpush2.bf16.msra.mxu0 0
        %601 = vmatprep.subr.bf16.mxu0 0
        %602 = vmatpush2.bf16.msra.mxu0 0
        %603 = vmatprep.subr.bf16.mxu0 0
        %604 = vmatpush2.bf16.msra.mxu0 0
        %605 = vmatprep.subr.bf16.mxu0 0
        %606 = vmatpush2.bf16.msra.mxu0 0
        %607 = vmatprep.subr.bf16.mxu0 0
        %608 = vmatpush2.bf16.msra.mxu0 0
        %609 = vmatprep.subr.bf16.mxu0 0
        %610 = vmatpush2.bf16.msra.mxu0 0
        %611 = vmatprep.subr.bf16.mxu0 0
        %612 = vmatpush2.bf16.msra.mxu0 0
        %613 = vmatprep.subr.bf16.mxu0 0
        %614 = vmatpush2.bf16.msra.mxu0 0
        %615 = vmatprep.mubr.bf16.mxu0 0
        %616 = vmatmul.mubr.bf16.gmra.mxu0 %v578
        %v617 = vpop.f32.mrf.mxu0
        %v618 = vadd.f32 0.0, %v617
        %v619 = vpop.f32.mrf.mxu0
        %v620 = vpop.f32.mrf.mxu0
        %v621 = vpop.f32.mrf.mxu0
        %622 = vdwg.mxu0
        %624 = vrot.lane.b32.xlu0 %v618, 8
        %v625 = vpop.permute.xlu0 %624
        %vm627 = vcmask 130112
        %628 = vst.msk [vmem:[#allocation2] sm:$0xff] %vm627, %v625
        %629 = vrot.lane.b32.xlu0 %v400, 112
        %v630 = vpop.permute.xlu0 %629
        %631 = vrot.lane.b32.xlu0 %v400, 80
        %v632 = vpop.permute.xlu0 %631
        %v634 = vsel %vm404, %v630, 0
        %v637 = vsel %vm404, %v632, 0
        %639 = vmatprep.subr.bf16.mxu0 0
        %640 = vmatpush1.bf16.xpose.msra.mxu0 0
        %641 = vmatprep.subr.bf16.mxu0 0
        %642 = vmatpush1.bf16.xpose.msra.mxu0 0
        %643 = vmatprep.subr.bf16.mxu0 0
        %644 = vmatpush1.bf16.xpose.msra.mxu0 0
        %645 = vmatprep.subr.bf16.mxu0 0
        %646 = vmatpush1.bf16.xpose.msra.mxu0 0
        %647 = vmatprep.subr.bf16.mxu0 0
        %648 = vmatpush1.bf16.xpose.msra.mxu0 0
        %649 = vmatprep.subr.bf16.mxu0 0
        %650 = vmatpush1.bf16.xpose.msra.mxu0 0
        %651 = vmatprep.subr.bf16.mxu0 0
        %652 = vmatpush1.bf16.xpose.msra.mxu0 0
        %653 = vmatprep.subr.bf16.mxu0 0
        %654 = vmatpush1.bf16.xpose.msra.mxu0 %v637
        %655 = vmatprep.subr.bf16.mxu0 0
        %656 = vmatpush2.bf16.xpose.msra.mxu0 0
        %657 = vmatprep.subr.bf16.mxu0 0
        %658 = vmatpush2.bf16.xpose.msra.mxu0 0
        %659 = vmatprep.subr.bf16.mxu0 0
        %660 = vmatpush2.bf16.xpose.msra.mxu0 0
        %661 = vmatprep.subr.bf16.mxu0 0
        %662 = vmatpush2.bf16.xpose.msra.mxu0 0
        %663 = vmatprep.subr.bf16.mxu0 0
        %664 = vmatpush2.bf16.xpose.msra.mxu0 0
        %665 = vmatprep.subr.bf16.mxu0 0
        %666 = vmatpush2.bf16.xpose.msra.mxu0 0
        %667 = vmatprep.subr.bf16.mxu0 0
        %668 = vmatpush2.bf16.xpose.msra.mxu0 0
        %669 = vmatprep.subr.bf16.mxu0 0
        %670 = vmatpush2.bf16.xpose.msra.mxu0 0
        %671 = vmatprep.mubr.bf16.mxu0 0
        %672 = vmatmul.mubr.bf16.gmra.mxu0 %v634
        %v673 = vpop.f32.mrf.mxu0
        %v674 = vadd.f32 0.0, %v673
        %v675 = vpop.f32.mrf.mxu0
        %v676 = vpop.f32.mrf.mxu0
        %v677 = vpop.f32.mrf.mxu0
        %678 = vdwg.mxu0
        %v679 = vsel %vm404, %v674, -inf
        %680 = vmax.xlane.f32.xlu0 %v679
        %v681 = vpop.xlane.xlu0 %680
        %v682 = vsub.f32 %v674, %v681
        %v683 = vmul.f32 %v682, 1.442695
        %v684 = vpow.pop %v683
        %v685 = vsel %vm404, %v684, 0.0
        %686 = vadd.xlane.f32.xlu0 %v685
        %v687 = vpop.xlane.xlu0 %686
        %v688 = vrcp.pop %v687
        %v689 = vmul.f32 %v684, %v688
        %v690 = vpack.c.bf16 %v689, %v689
        %691 = vrot.lane.b32.xlu0 %v400, 48
        %v692 = vpop.permute.xlu0 %691
        %v694 = vsel %vm404, %v690, 0
        %v697 = vsel %vm468, %v692, 0
        %699 = vmatprep.subr.bf16.mxu0 0
        %700 = vmatpush1.bf16.msra.mxu0 0
        %701 = vmatprep.subr.bf16.mxu0 0
        %702 = vmatpush1.bf16.msra.mxu0 0
        %703 = vmatprep.subr.bf16.mxu0 0
        %704 = vmatpush1.bf16.msra.mxu0 0
        %705 = vmatprep.subr.bf16.mxu0 0
        %706 = vmatpush1.bf16.msra.mxu0 0
        %707 = vmatprep.subr.bf16.mxu0 0
        %708 = vmatpush1.bf16.msra.mxu0 0
        %709 = vmatprep.subr.bf16.mxu0 0
        %710 = vmatpush1.bf16.msra.mxu0 0
        %711 = vmatprep.subr.bf16.mxu0 0
        %712 = vmatpush1.bf16.msra.mxu0 0
        %713 = vmatprep.subr.bf16.mxu0 0
        %714 = vmatpush1.bf16.msra.mxu0 %v697
        %715 = vmatprep.subr.bf16.mxu0 0
        %716 = vmatpush2.bf16.msra.mxu0 0
        %717 = vmatprep.subr.bf16.mxu0 0
        %718 = vmatpush2.bf16.msra.mxu0 0
        %719 = vmatprep.subr.bf16.mxu0 0
        %720 = vmatpush2.bf16.msra.mxu0 0
        %721 = vmatprep.subr.bf16.mxu0 0
        %722 = vmatpush2.bf16.msra.mxu0 0
        %723 = vmatprep.subr.bf16.mxu0 0
        %724 = vmatpush2.bf16.msra.mxu0 0
        %725 = vmatprep.subr.bf16.mxu0 0
        %726 = vmatpush2.bf16.msra.mxu0 0
        %727 = vmatprep.subr.bf16.mxu0 0
        %728 = vmatpush2.bf16.msra.mxu0 0
        %729 = vmatprep.subr.bf16.mxu0 0
        %730 = vmatpush2.bf16.msra.mxu0 0
        %731 = vmatprep.mubr.bf16.mxu0 0
        %732 = vmatmul.mubr.bf16.gmra.mxu0 %v694
        %v733 = vpop.f32.mrf.mxu0
        %v734 = vadd.f32 0.0, %v733
        %v735 = vpop.f32.mrf.mxu0
        %v736 = vpop.f32.mrf.mxu0
        %v737 = vpop.f32.mrf.mxu0
        %738 = vdwg.mxu0
        %740 = vrot.lane.b32.xlu0 %v734, 16
        %v741 = vpop.permute.xlu0 %740
        %vm743 = vcmask 195712
        %744 = vst.msk [vmem:[#allocation2] sm:$0xff] %vm743, %v741
        %745 = vrot.lane.b32.xlu0 %v400, 104
        %v746 = vpop.permute.xlu0 %745
        %747 = vrot.lane.b32.xlu0 %v400, 72
        %v748 = vpop.permute.xlu0 %747
        %v750 = vsel %vm404, %v746, 0
        %v753 = vsel %vm404, %v748, 0
        %755 = vmatprep.subr.bf16.mxu0 0
        %756 = vmatpush1.bf16.xpose.msra.mxu0 0
        %757 = vmatprep.subr.bf16.mxu0 0
        %758 = vmatpush1.bf16.xpose.msra.mxu0 0
        %759 = vmatprep.subr.bf16.mxu0 0
        %760 = vmatpush1.bf16.xpose.msra.mxu0 0
        %761 = vmatprep.subr.bf16.mxu0 0
        %762 = vmatpush1.bf16.xpose.msra.mxu0 0
        %763 = vmatprep.subr.bf16.mxu0 0
        %764 = vmatpush1.bf16.xpose.msra.mxu0 0
        %765 = vmatprep.subr.bf16.mxu0 0
        %766 = vmatpush1.bf16.xpose.msra.mxu0 0
        %767 = vmatprep.subr.bf16.mxu0 0
        %768 = vmatpush1.bf16.xpose.msra.mxu0 0
        %769 = vmatprep.subr.bf16.mxu0 0
        %770 = vmatpush1.bf16.xpose.msra.mxu0 %v753
        %771 = vmatprep.subr.bf16.mxu0 0
        %772 = vmatpush2.bf16.xpose.msra.mxu0 0
        %773 = vmatprep.subr.bf16.mxu0 0
        %774 = vmatpush2.bf16.xpose.msra.mxu0 0
        %775 = vmatprep.subr.bf16.mxu0 0
        %776 = vmatpush2.bf16.xpose.msra.mxu0 0
        %777 = vmatprep.subr.bf16.mxu0 0
        %778 = vmatpush2.bf16.xpose.msra.mxu0 0
        %779 = vmatprep.subr.bf16.mxu0 0
        %780 = vmatpush2.bf16.xpose.msra.mxu0 0
        %781 = vmatprep.subr.bf16.mxu0 0
        %782 = vmatpush2.bf16.xpose.msra.mxu0 0
        %783 = vmatprep.subr.bf16.mxu0 0
        %784 = vmatpush2.bf16.xpose.msra.mxu0 0
        %785 = vmatprep.subr.bf16.mxu0 0
        %786 = vmatpush2.bf16.xpose.msra.mxu0 0
        %787 = vmatprep.mubr.bf16.mxu0 0
        %788 = vmatmul.mubr.bf16.gmra.mxu0 %v750
        %v789 = vpop.f32.mrf.mxu0
        %v790 = vadd.f32 0.0, %v789
        %v791 = vpop.f32.mrf.mxu0
        %v792 = vpop.f32.mrf.mxu0
        %v793 = vpop.f32.mrf.mxu0
        %794 = vdwg.mxu0
        %v795 = vsel %vm404, %v790, -inf
        %796 = vmax.xlane.f32.xlu0 %v795
        %v797 = vpop.xlane.xlu0 %796
        %v798 = vsub.f32 %v790, %v797
        %v799 = vmul.f32 %v798, 1.442695
        %v800 = vpow.pop %v799
        %v801 = vsel %vm404, %v800, 0.0
        %802 = vadd.xlane.f32.xlu0 %v801
        %v803 = vpop.xlane.xlu0 %802
        %v804 = vrcp.pop %v803
        %v805 = vmul.f32 %v800, %v804
        %v806 = vpack.c.bf16 %v805, %v805
        %807 = vrot.lane.b32.xlu0 %v400, 40
        %v808 = vpop.permute.xlu0 %807
        %v810 = vsel %vm404, %v806, 0
        %v813 = vsel %vm468, %v808, 0
        %815 = vmatprep.subr.bf16.mxu0 0
        %816 = vmatpush1.bf16.msra.mxu0 0
        %817 = vmatprep.subr.bf16.mxu0 0
        %818 = vmatpush1.bf16.msra.mxu0 0
        %819 = vmatprep.subr.bf16.mxu0 0
        %820 = vmatpush1.bf16.msra.mxu0 0
        %821 = vmatprep.subr.bf16.mxu0 0
        %822 = vmatpush1.bf16.msra.mxu0 0
        %823 = vmatprep.subr.bf16.mxu0 0
        %824 = vmatpush1.bf16.msra.mxu0 0
        %825 = vmatprep.subr.bf16.mxu0 0
        %826 = vmatpush1.bf16.msra.mxu0 0
        %827 = vmatprep.subr.bf16.mxu0 0
        %828 = vmatpush1.bf16.msra.mxu0 0
        %829 = vmatprep.subr.bf16.mxu0 0
        %830 = vmatpush1.bf16.msra.mxu0 %v813
        %831 = vmatprep.subr.bf16.mxu0 0
        %832 = vmatpush2.bf16.msra.mxu0 0
        %833 = vmatprep.subr.bf16.mxu0 0
        %834 = vmatpush2.bf16.msra.mxu0 0
        %835 = vmatprep.subr.bf16.mxu0 0
        %836 = vmatpush2.bf16.msra.mxu0 0
        %837 = vmatprep.subr.bf16.mxu0 0
        %838 = vmatpush2.bf16.msra.mxu0 0
        %839 = vmatprep.subr.bf16.mxu0 0
        %840 = vmatpush2.bf16.msra.mxu0 0
        %841 = vmatprep.subr.bf16.mxu0 0
        %842 = vmatpush2.bf16.msra.mxu0 0
        %843 = vmatprep.subr.bf16.mxu0 0
        %844 = vmatpush2.bf16.msra.mxu0 0
        %845 = vmatprep.subr.bf16.mxu0 0
        %846 = vmatpush2.bf16.msra.mxu0 0
        %847 = vmatprep.mubr.bf16.mxu0 0
        %848 = vmatmul.mubr.bf16.gmra.mxu0 %v810
        %v849 = vpop.f32.mrf.mxu0
        %v850 = vadd.f32 0.0, %v849
        %v851 = vpop.f32.mrf.mxu0
        %v852 = vpop.f32.mrf.mxu0
        %v853 = vpop.f32.mrf.mxu0
        %854 = vdwg.mxu0
        %856 = vrot.lane.b32.xlu0 %v850, 24
        %v857 = vpop.permute.xlu0 %856
        %vm859 = vcmask 261312
        %860 = vst.msk [vmem:[#allocation2] sm:$0xff] %vm859, %v857
        %v861 = vld [vmem:[#allocation2] sm:$0xff]
        %v862 = vpack.c.bf16 %v861, %v861
        %v863 = vld [vmem:[%s3] sm:$0xf]
        %v864 = vld [vmem:[%s3 + $0x4] sm:$0xf]
        %v865 = vld [vmem:[%s3 + $0x8] sm:$0xf]
        %v866 = vld [vmem:[%s3 + $0xc] sm:$0xf]
        %v867 = vlaneseq
        %v868 = vshrl.u32 %v867, 7
        %v869 = vsub.s32 0, %v868
        %v870 = vrot.slane %v331, %v869
        %v875 = vunpack.c.l.b16 %v863
        %v876 = vunpack.c.l.b16 %v864
        %v877 = vunpack.c.l.b16 %v865
        %v878 = vunpack.c.l.b16 %v866
        %v879 = vpack.c.b16 %v876, %v875
        %v880 = vpack.c.b16 %v878, %v877
        %v884 = vsel %vm356, %v862, 0
        %886 = vmatprep.subr.bf16.mxu0 0
        %887 = vmatpush1.bf16.msra.mxu0 0
        %888 = vmatprep.subr.bf16.mxu0 0
        %889 = vmatpush1.bf16.msra.mxu0 0
        %890 = vmatprep.subr.bf16.mxu0 0
        %891 = vmatpush1.bf16.msra.mxu0 0
        %892 = vmatprep.subr.bf16.mxu0 0
        %893 = vmatpush1.bf16.msra.mxu0 0
        %894 = vmatprep.subr.bf16.mxu0 0
        %895 = vmatpush1.bf16.msra.mxu0 0
        %896 = vmatprep.subr.bf16.mxu0 0
        %897 = vmatpush1.bf16.msra.mxu0 0
        %898 = vmatprep.subr.bf16.mxu0 0
        %899 = vmatpush1.bf16.msra.mxu0 %v880
        %900 = vmatprep.subr.bf16.mxu0 0
        %901 = vmatpush1.bf16.msra.mxu0 %v879
        %902 = vmatprep.subr.bf16.mxu0 0
        %903 = vmatpush2.bf16.msra.mxu0 0
        %904 = vmatprep.subr.bf16.mxu0 0
        %905 = vmatpush2.bf16.msra.mxu0 0
        %906 = vmatprep.subr.bf16.mxu0 0
        %907 = vmatpush2.bf16.msra.mxu0 0
        %908 = vmatprep.subr.bf16.mxu0 0
        %909 = vmatpush2.bf16.msra.mxu0 0
        %910 = vmatprep.subr.bf16.mxu0 0
        %911 = vmatpush2.bf16.msra.mxu0 0
        %912 = vmatprep.subr.bf16.mxu0 0
        %913 = vmatpush2.bf16.msra.mxu0 0
        %914 = vmatprep.subr.bf16.mxu0 0
        %915 = vmatpush2.bf16.msra.mxu0 0
        %916 = vmatprep.subr.bf16.mxu0 0
        %917 = vmatpush2.bf16.msra.mxu0 0
        %918 = vmatprep.mubr.bf16.mxu0 0
        %919 = vmatmul.mubr.bf16.gmra.mxu0 %v884
        %v920 = vpop.f32.mrf.mxu0
        %v921 = vadd.f32 %v870, %v920
        %v922 = vpop.f32.mrf.mxu0
        %v923 = vpop.f32.mrf.mxu0
        %v924 = vpop.f32.mrf.mxu0
        %925 = vdwg.mxu0
        %v926 = vadd.f32 %v330, %v921
        %v927 = vsel %vm356, %v926, 0.0
        %928 = vadd.xlane.f32.xlu0 %v927
        %v929 = vpop.xlane.xlu0 %928
        %v930 = vrcp.pop 32.0
        %v931 = vmul.f32 %v929, %v930
        %v932 = vmul.f32 %v926, %v926
        %v933 = vsel %vm356, %v932, 0.0
        %934 = vadd.xlane.f32.xlu0 %v933
        %v935 = vpop.xlane.xlu0 %934
        %v936 = vmul.f32 %v935, %v930
        %v937 = vmul.f32 %v931, %v931
        %v938 = vsub.f32 %v936, %v937
        %v939 = vmax.f32 %v938, 0.0
        %v940 = vsub.f32 %v926, %v931
        %v941 = vadd.f32 %v939, 1e-05
        %v942 = vrsqrt.pop %v941
        %v943 = vmul.f32 %v940, %v942
        %v944 = vlaneseq
        %v945 = vshrl.u32 %v944, 7
        %v946 = vsub.s32 1, %v945
        %v947 = vrot.slane %v331, %v946
        %v948 = vmul.f32 %v943, %v947
        %v949 = vlaneseq
        %v950 = vshrl.u32 %v949, 7
        %v951 = vsub.s32 2, %v950
        %v952 = vrot.slane %v331, %v951
        %v953 = vadd.f32 %v948, %v952
        %v954 = vpack.c.bf16 %v953, %v953
        %v955 = vld [vmem:[#allocation3] sm:$0xf]
        %v956 = vld [vmem:[#allocation3 + $0x4] sm:$0xf]
        %v957 = vld [vmem:[#allocation3 + $0x8] sm:$0xf]
        %v958 = vld [vmem:[#allocation3 + $0xc] sm:$0xf]
        %v959 = vld [vmem:[#allocation6] sm:$0x1]
        %v961 = vlaneseq
        %v962 = vshrl.u32 %v961, 7
        %v963 = vsub.s32 0, %v962
        %v964 = vrot.slane %v959, %v963
        %v970 = vunpack.c.l.b16 %v955
        %v971 = vunpack.c.l.b16 %v956
        %v972 = vunpack.c.l.b16 %v957
        %v973 = vunpack.c.l.b16 %v958
        %v974 = vpack.c.b16 %v971, %v970
        %v975 = vpack.c.b16 %v973, %v972
        %v979 = vsel %vm356, %v954, 0
        %981 = vmatprep.subr.bf16.mxu0 0
        %982 = vmatpush1.bf16.msra.mxu0 0
        %983 = vmatprep.subr.bf16.mxu0 0
        %984 = vmatpush1.bf16.msra.mxu0 0
        %985 = vmatprep.subr.bf16.mxu0 0
        %986 = vmatpush1.bf16.msra.mxu0 0
        %987 = vmatprep.subr.bf16.mxu0 0
        %988 = vmatpush1.bf16.msra.mxu0 0
        %989 = vmatprep.subr.bf16.mxu0 0
        %990 = vmatpush1.bf16.msra.mxu0 0
        %991 = vmatprep.subr.bf16.mxu0 0
        %992 = vmatpush1.bf16.msra.mxu0 0
        %993 = vmatprep.subr.bf16.mxu0 0
        %994 = vmatpush1.bf16.msra.mxu0 %v975
        %995 = vmatprep.subr.bf16.mxu0 0
        %996 = vmatpush1.bf16.msra.mxu0 %v974
        %997 = vmatprep.subr.bf16.mxu0 0
        %998 = vmatpush2.bf16.msra.mxu0 0
        %999 = vmatprep.subr.bf16.mxu0 0
        %1000 = vmatpush2.bf16.msra.mxu0 0
        %1001 = vmatprep.subr.bf16.mxu0 0
        %1002 = vmatpush2.bf16.msra.mxu0 0
        %1003 = vmatprep.subr.bf16.mxu0 0
        %1004 = vmatpush2.bf16.msra.mxu0 0
        %1005 = vmatprep.subr.bf16.mxu0 0
        %1006 = vmatpush2.bf16.msra.mxu0 0
        %1007 = vmatprep.subr.bf16.mxu0 0
        %1008 = vmatpush2.bf16.msra.mxu0 0
        %1009 = vmatprep.subr.bf16.mxu0 0
        %1010 = vmatpush2.bf16.msra.mxu0 0
        %1011 = vmatprep.subr.bf16.mxu0 0
        %1012 = vmatpush2.bf16.msra.mxu0 0
        %1013 = vmatprep.mubr.bf16.mxu0 0
        %1014 = vmatmul.mubr.bf16.gmra.mxu0 %v979
        %v1015 = vpop.f32.mrf.mxu0
        %v1016 = vadd.f32 %v964, %v1015
        %v1017 = vpop.f32.mrf.mxu0
        %v1018 = vpop.f32.mrf.mxu0
        %v1019 = vpop.f32.mrf.mxu0
        %1020 = vdwg.mxu0
        %v1021 = vmax.f32 %v1016, 0.0
        %v1022 = vpack.c.bf16 %v1021, %v1021
        %v1023 = vld [vmem:[%s6] sm:$0xf]
        %v1024 = vld [vmem:[%s6 + $0x4] sm:$0xf]
        %v1025 = vld [vmem:[%s6 + $0x8] sm:$0xf]
        %v1026 = vld [vmem:[%s6 + $0xc] sm:$0xf]
        %v1027 = vld [vmem:[%s6 + $0x10] sm:$0xf]
        %v1028 = vld [vmem:[%s6 + $0x14] sm:$0xf]
        %v1029 = vld [vmem:[%s6 + $0x18] sm:$0xf]
        %v1030 = vld [vmem:[%s6 + $0x1c] sm:$0xf]
        %v1031 = vlaneseq
        %v1032 = vshrl.u32 %v1031, 7
        %v1033 = vsub.s32 3, %v1032
        %v1034 = vrot.slane %v331, %v1033
        %v1043 = vunpack.c.l.b16 %v1023
        %v1044 = vunpack.c.l.b16 %v1024
        %v1045 = vunpack.c.l.b16 %v1025
        %v1046 = vunpack.c.l.b16 %v1026
        %v1047 = vunpack.c.l.b16 %v1027
        %v1048 = vunpack.c.l.b16 %v1028
        %v1049 = vunpack.c.l.b16 %v1029
        %v1050 = vunpack.c.l.b16 %v1030
        %v1051 = vpack.c.b16 %v1044, %v1043
        %v1052 = vpack.c.b16 %v1046, %v1045
        %v1053 = vpack.c.b16 %v1048, %v1047
        %v1054 = vpack.c.b16 %v1050, %v1049
        %vm1059 = vcmask 523264
        %v1061 = vsel %vm1059, %v1022, 0
        %1063 = vmatprep.subr.bf16.mxu0 0
        %1064 = vmatpush1.bf16.msra.mxu0 0
        %1065 = vmatprep.subr.bf16.mxu0 0
        %1066 = vmatpush1.bf16.msra.mxu0 0
        %1067 = vmatprep.subr.bf16.mxu0 0
        %1068 = vmatpush1.bf16.msra.mxu0 0
        %1069 = vmatprep.subr.bf16.mxu0 0
        %1070 = vmatpush1.bf16.msra.mxu0 0
        %1071 = vmatprep.subr.bf16.mxu0 0
        %1072 = vmatpush1.bf16.msra.mxu0 %v1054
        %1073 = vmatprep.subr.bf16.mxu0 0
        %1074 = vmatpush1.bf16.msra.mxu0 %v1053
        %1075 = vmatprep.subr.bf16.mxu0 0
        %1076 = vmatpush1.bf16.msra.mxu0 %v1052
        %1077 = vmatprep.subr.bf16.mxu0 0
        %1078 = vmatpush1.bf16.msra.mxu0 %v1051
        %1079 = vmatprep.subr.bf16.mxu0 0
        %1080 = vmatpush2.bf16.msra.mxu0 0
        %1081 = vmatprep.subr.bf16.mxu0 0
        %1082 = vmatpush2.bf16.msra.mxu0 0
        %1083 = vmatprep.subr.bf16.mxu0 0
        %1084 = vmatpush2.bf16.msra.mxu0 0
        %1085 = vmatprep.subr.bf16.mxu0 0
        %1086 = vmatpush2.bf16.msra.mxu0 0
        %1087 = vmatprep.subr.bf16.mxu0 0
        %1088 = vmatpush2.bf16.msra.mxu0 0
        %1089 = vmatprep.subr.bf16.mxu0 0
        %1090 = vmatpush2.bf16.msra.mxu0 0
        %1091 = vmatprep.subr.bf16.mxu0 0
        %1092 = vmatpush2.bf16.msra.mxu0 0
        %1093 = vmatprep.subr.bf16.mxu0 0
        %1094 = vmatpush2.bf16.msra.mxu0 0
        %1095 = vmatprep.mubr.bf16.mxu0 0
        %1096 = vmatmul.mubr.bf16.gmra.mxu0 %v1061
        %v1097 = vpop.f32.mrf.mxu0
        %v1098 = vadd.f32 %v1034, %v1097
        %v1099 = vpop.f32.mrf.mxu0
        %v1100 = vpop.f32.mrf.mxu0
        %v1101 = vpop.f32.mrf.mxu0
        %1102 = vdwg.mxu0
        %v1103 = vadd.f32 %v953, %v1098
        %v1104 = vsel %vm356, %v1103, 0.0
        %1105 = vadd.xlane.f32.xlu0 %v1104
        %v1106 = vpop.xlane.xlu0 %1105
        %v1107 = vmul.f32 %v1106, %v930
        %v1108 = vmul.f32 %v1103, %v1103
        %v1109 = vsel %vm356, %v1108, 0.0
        %1110 = vadd.xlane.f32.xlu0 %v1109
        %v1111 = vpop.xlane.xlu0 %1110
        %v1112 = vmul.f32 %v1111, %v930
        %v1113 = vmul.f32 %v1107, %v1107
        %v1114 = vsub.f32 %v1112, %v1113
        %v1115 = vmax.f32 %v1114, 0.0
        %v1116 = vsub.f32 %v1103, %v1107
        %v1117 = vadd.f32 %v1115, 1e-05
        %v1118 = vrsqrt.pop %v1117
        %v1119 = vmul.f32 %v1116, %v1118
        %v1120 = vlaneseq
        %v1121 = vshrl.u32 %v1120, 7
        %v1122 = vsub.s32 4, %v1121
        %v1123 = vrot.slane %v331, %v1122
        %v1124 = vmul.f32 %v1119, %v1123
        %v1125 = vlaneseq
        %v1126 = vshrl.u32 %v1125, 7
        %v1127 = vsub.s32 5, %v1126
        %v1128 = vrot.slane %v331, %v1127
        %v1129 = vadd.f32 %v1124, %v1128
        %1130 = vst.msk [vmem:[%s324] sm:$0xff] %vm356, %v1129
        %s1131 = sand.u32 %s205, 1
        %s1132 = scalar_lea.sflag [#allocation5], %s1131
        %s1133 = sand.u32 %s205, 1
        %s1134 = smul.addr %s1133, 8
        %s1135 = scalar_lea.vmem [#allocation8], %s1134
        // Predicated region
        $region61: #{tpu_custom_call.1} parent=51 // pred_check
          %p1136 = pneg %p215
        $region62: #{tpu_custom_call.1} parent=51 // pred_check_branch
          %1138 = sbr.rel (%p1136) target = $region64
        $region63: #{tpu_custom_call.1} parent=51 // pred_region
          %s1140 = ssub.s32 128, 128
          %1141 = vsyncadd %s1132, %s1140
          %s1142 = smul.addr %s24, 128
          %s1143 = scalar_lea.hbm %s8, %s1142
          %s1145 = sshll.u32 %s1135, 4
          %s1146 = int_to_ptr.vmem [resolvable:$true] %s1145
          %1148 = dma.vmem_to_hbm [thread:$0]  %s1146, 128, %s1143, %s1132
        $region64: #{tpu_custom_call.1} parent=51 // pred_fallthru
          _
      $region52: #{tpu_custom_call.1} parent=5 // pred_fallthru
        _
      %p1149 = scmp.le.s32.totalorder 2, %s19
      // Predicated region
      $region65: #{tpu_custom_call.1} parent=5 // pred_check
        %p1150 = pneg %p1149
      $region66: #{tpu_custom_call.1} parent=5 // pred_check_branch
        %1152 = sbr.rel (%p1150) target = $region68
      $region67: #{tpu_custom_call.1} parent=5 // pred_region
        %s1153 = ssub.s32 %s19, 2
        // Predicated region
        $region69: #{tpu_custom_call.1} parent=67 // pred_check
          %p1154 = pneg %p221
        $region70: #{tpu_custom_call.1} parent=67 // pred_check_branch
          %1156 = sbr.rel (%p1154) target = $region72
        $region71: #{tpu_custom_call.1} parent=67 // pred_region
          %s1157 = sand.u32 %s206, 1
          %s1158 = scalar_lea.sflag [#allocation5], %s1157
          %s1159 = sand.u32 %s206, 1
          %s1160 = smul.addr %s1159, 8
          %s1161 = scalar_lea.vmem [#allocation8], %s1160
          %1162 = dma.done %s1158, 128
        $region72: #{tpu_custom_call.1} parent=67 // pred_fallthru
          _
      $region68: #{tpu_custom_call.1} parent=5 // pred_fallthru
        _
    $region6: #{tpu_custom_call.1} parent=1 // loop_footer
      %s23 = sadd.s32 1, %s19
    $region7: #{tpu_custom_call.1} parent=1 // loop_footer_branch
      %18 = sbr.rel target = $region3
    $region8: #{tpu_custom_call.1} parent=1 // loop_exit
      _
    %1163 = vsyncpa [#allocation4], 1
    %s1164 = scalar_lea.sflag [#allocation4], 1
    %1165 = vsyncpa %s1164, 1
    %1166 = vsyncpa [#allocation7], 1
    %1167 = vsyncpa [#allocation5], 1
    %s1168 = scalar_lea.sflag [#allocation5], 1
    %1169 = vsyncpa %s1168, 1

</llo_original>
